<compile_context>
chip_gen: v6e
topology: v6e:2x2x1
jax: 0.10.0
libtpu: 0.0.40
codegen_flags: <defaults>
</compile_context>

<pallas_src>
import functools

import jax
import jax.numpy as jnp
from jax.experimental import pallas as pl
from jax.experimental.pallas import tpu as pltpu


def _gru_kernel(ids_ref, h0_ref, wih_ref, whh_ref, bias_ref, wout_ref,
                logits_ref, hfin_ref, hs_scratch,
                *, seq, batch, vocab, hidden):
    """One invocation == the whole sequence (no grid; time loop is unrolled)."""
    sb = seq * batch
    H = hidden

    # ---- Build the one-hot in-kernel from token ids (no HBM one-hot). ----
    ids = ids_ref[...]                                            # (S*B, 1) i32
    iota = jax.lax.broadcasted_iota(jnp.int32, (sb, vocab), 1)    # (S*B, V)
    onehot = (iota == ids).astype(jnp.float32)                    # (S*B, V)

    # ---- Hoisted, fused input projection: one matmul for all steps/gates. --
    # bias layout: [ b_ih_r + b_hh_r | b_ih_z + b_hh_z | b_ih_n | b_hh_n ]
    bias = bias_ref[...]                                          # (1, 4H)
    gi_all = (jnp.dot(onehot, wih_ref[...],
                      preferred_element_type=jnp.float32)
              + bias[:, :3 * H])                                  # (S*B, 3H)
    gi_r = gi_all[:, 0 * H:1 * H]
    gi_z = gi_all[:, 1 * H:2 * H]
    gi_n = gi_all[:, 2 * H:3 * H]

    whh = whh_ref[...]                                            # (H, 3H)
    # Hoisted broadcast of b_hh_n (kept separate: it is scaled by r).
    b_hn = jnp.broadcast_to(bias[:, 3 * H:4 * H], (batch, H))     # (B, H)

    # ---- Recurrence: one fused MXU op per step on the critical path. ----
    h = h0_ref[...].astype(jnp.float32)                           # (B, H)
    for t in range(seq):                                          # static unroll
        lo = t * batch
        gh = jnp.dot(h, whh, preferred_element_type=jnp.float32)  # (B, 3H)
        r = jax.nn.sigmoid(gi_r[lo:lo + batch, :] + gh[:, 0 * H:1 * H])
        z = jax.nn.sigmoid(gi_z[lo:lo + batch, :] + gh[:, 1 * H:2 * H])
        n = jnp.tanh(gi_n[lo:lo + batch, :]
                     + r * (gh[:, 2 * H:3 * H] + b_hn))
        h = n + z * (h - n)                  # == (1-z)*n + z*h, one fewer op
        hs_scratch[lo:lo + batch, :] = h     # store slot, off the compute chain

    # ---- Output head: single matmul; wout's last row is the Linear bias. ---
    wout_full = wout_ref[...]                                     # (H+1, O)
    logits = (jnp.dot(hs_scratch[...], wout_full[:H, :],
                      preferred_element_type=jnp.float32)
              + wout_full[H:H + 1, :])
    logits_ref[...] = logits.astype(logits_ref.dtype)
    hfin_ref[...] = h.astype(hfin_ref.dtype)                      # written once


def gru_forward(x_ids, h0, w_ih, w_hh, b_ih, b_hh, w_out, b_out):
    """x_ids: (B, S) int32 token ids; h0: (B, H).

    Returns (logits (S*B, O), new_state (1, B, H)) matching the PyTorch module.
    """
    B, S = x_ids.shape
    H = h0.shape[-1]
    V = w_ih.shape[1]
    O = w_out.shape[0]

    # Time-major flattened ids: row s*B + b <-> (time s, batch b), matching
    # gru_result.view(-1, hiddens) row order in the PyTorch module.
    ids = jnp.asarray(x_ids, jnp.int32).T.reshape(S * B, 1)

    w_ih = jnp.asarray(w_ih, jnp.float32)
    w_hh = jnp.asarray(w_hh, jnp.float32)
    b_ih = jnp.asarray(b_ih, jnp.float32)
    b_hh = jnp.asarray(b_hh, jnp.float32)

    # Packed, pre-transposed weights (PyTorch gate order [r | z | n] kept).
    wih_p = w_ih.T                                               # (V, 3H)
    whh_p = w_hh.T                                               # (H, 3H)

    # Packed biases: r/z biases are summed up-front (they sit before the
    # sigmoid); the n-gate keeps b_hh_n separate because it is scaled by r.
    bias_pack = jnp.concatenate([
        b_ih[0 * H:1 * H] + b_hh[0 * H:1 * H],
        b_ih[1 * H:2 * H] + b_hh[1 * H:2 * H],
        b_ih[2 * H:3 * H],
        b_hh[2 * H:3 * H],
    ]).reshape(1, 4 * H)

    # Output head weight with its bias appended as the last row.
    wout_pack = jnp.concatenate(
        [jnp.asarray(w_out, jnp.float32).T,
         jnp.asarray(b_out, jnp.float32).reshape(1, O)], axis=0)  # (H+1, O)

    kernel = functools.partial(_gru_kernel, seq=S, batch=B, vocab=V, hidden=H)
    vmem = pl.BlockSpec(memory_space=pltpu.MemorySpace.VMEM)

    logits, h_final = pl.pallas_call(
        kernel,
        out_shape=(
            jax.ShapeDtypeStruct((S * B, O), jnp.float32),
            jax.ShapeDtypeStruct((B, H), jnp.float32),
        ),
        in_specs=[vmem] * 6,
        out_specs=(vmem, vmem),
        scratch_shapes=[pltpu.VMEM((S * B, H), jnp.float32)],
    )(ids, jnp.asarray(h0, jnp.float32), wih_p, whh_p, bias_pack, wout_pack)

    return logits, h_final.reshape(1, B, H)


def gru_reference(x_onehot, h0, w_ih, w_hh, b_ih, b_hh, w_out, b_out):
    """Pure-JAX reference (PyTorch nn.GRU semantics) for verification."""
    H = h0.shape[-1]

    def step(h, x_t):
        gi = x_t @ w_ih.T + b_ih
        gh = h @ w_hh.T + b_hh
        i_r, i_z, i_n = gi[:, :H], gi[:, H:2 * H], gi[:, 2 * H:]
        h_r, h_z, h_n = gh[:, :H], gh[:, H:2 * H], gh[:, 2 * H:]
        r = jax.nn.sigmoid(i_r + h_r)
        z = jax.nn.sigmoid(i_z + h_z)
        n = jnp.tanh(i_n + r * h_n)
        h_new = (1.0 - z) * n + z * h
        return h_new, h_new

    h_last, hs = jax.lax.scan(step, h0, x_onehot)
    S, B, _ = x_onehot.shape
    logits = hs.reshape(S * B, H) @ w_out.T + b_out
    return logits, h_last.reshape(1, B, H)


if __name__ == "__main__":
    # Module hyper-parameters (small, consistent with the forward pass).
    VOCAB = 16      # `inputs`  (one-hot width == vocab size)
    HIDDEN = 32     # `hiddens`
    OUT = 16        # `outputs`
    BATCH = 2
    SEQ = 8

    key = jax.random.PRNGKey(0)
    ks = jax.random.split(key, 8)
    bound = 1.0 / jnp.sqrt(HIDDEN)  # PyTorch default GRU/Linear init range

    # GRU parameters (gate order [r, z, n] along the 3H axis, PyTorch style).
    w_ih = jax.random.uniform(ks[0], (3 * HIDDEN, VOCAB), jnp.float32, -bound, bound)
    w_hh = jax.random.uniform(ks[1], (3 * HIDDEN, HIDDEN), jnp.float32, -bound, bound)
    b_ih = jax.random.uniform(ks[2], (3 * HIDDEN,), jnp.float32, -bound, bound)
    b_hh = jax.random.uniform(ks[3], (3 * HIDDEN,), jnp.float32, -bound, bound)
    # Linear head parameters.
    w_out = jax.random.uniform(ks[4], (OUT, HIDDEN), jnp.float32, -bound, bound)
    b_out = jax.random.uniform(ks[5], (OUT,), jnp.float32, -bound, bound)

    # Token-id input x: (batch, seq); state=None -> zeros like PyTorch.
    x_ids = jax.random.randint(ks[6], (BATCH, SEQ), 0, VOCAB, dtype=jnp.int32)
    h0 = jnp.zeros((BATCH, HIDDEN), jnp.float32)

    result, new_state = gru_forward(x_ids, h0, w_ih, w_hh, b_ih, b_hh,
                                    w_out, b_out)
    result = jax.block_until_ready(result)
    new_state = jax.block_until_ready(new_state)

    # Verify against the pure-JAX reference (one-hot built only for the ref).
    x_onehot = jax.nn.one_hot(x_ids.T, VOCAB, dtype=jnp.float32)  # (S, B, V)
    ref_result, ref_state = gru_reference(x_onehot, h0, w_ih, w_hh, b_ih, b_hh,
                                          w_out, b_out)
    assert result.shape == (SEQ * BATCH, OUT)
    assert new_state.shape == (1, BATCH, HIDDEN)
    assert jnp.allclose(result, ref_result, atol=1e-5, rtol=1e-5)
    assert jnp.allclose(new_state, ref_state, atol=1e-5, rtol=1e-5)

    print("KERNEL_OK")
</pallas_src>

<mosaic_0001>
module attributes {stable_mosaic.version = 11 : i64} {
  func.func @_gru_kernel(%arg0: memref<16x1xi32, #tpu.memory_space<vmem>>, %arg1: memref<2x32xf32, #tpu.memory_space<vmem>>, %arg2: memref<16x96xf32, #tpu.memory_space<vmem>>, %arg3: memref<32x96xf32, #tpu.memory_space<vmem>>, %arg4: memref<1x128xf32, #tpu.memory_space<vmem>>, %arg5: memref<33x16xf32, #tpu.memory_space<vmem>>, %arg6: memref<16x16xf32, #tpu.memory_space<vmem>>, %arg7: memref<2x32xf32, #tpu.memory_space<vmem>>, %arg8: memref<16x32xf32, #tpu.memory_space<vmem>>) attributes {dimension_semantics = [], scalar_prefetch = 0 : i64, scratch_operands = 1 : i64, tpu.core_type = #tpu.core_type<tc>} {
    %c0 = arith.constant 0 : index
    %c0_0 = arith.constant 0 : index
    %0 = vector.load %arg0[%c0, %c0_0] : memref<16x1xi32, #tpu.memory_space<vmem>>, vector<16x1xi32>
    %1 = tpu.iota {dimensions = array<i32: 1>} : vector<16x16xi32>
    %2 = vector.broadcast %0 : vector<16x1xi32> to vector<16x16xi32>
    %3 = arith.cmpi eq, %1, %2 : vector<16x16xi32>
    %4 = arith.extui %3 : vector<16x16xi1> to vector<16x16xi32>
    %5 = arith.sitofp %4 : vector<16x16xi32> to vector<16x16xf32>
    %c0_1 = arith.constant 0 : index
    %c0_2 = arith.constant 0 : index
    %6 = vector.load %arg4[%c0_1, %c0_2] : memref<1x128xf32, #tpu.memory_space<vmem>>, vector<1x128xf32>
    %c0_3 = arith.constant 0 : index
    %c0_4 = arith.constant 0 : index
    %7 = vector.load %arg2[%c0_3, %c0_4] : memref<16x96xf32, #tpu.memory_space<vmem>>, vector<16x96xf32>
    %cst = arith.constant dense<0.000000e+00> : vector<16x96xf32>
    %8 = tpu.matmul %5, %7, %cst {dimension_numbers = #tpu.dot_dimension_numbers<[1], [0], [0], [1], [0, 0, 1, 1], [], []>} : vector<16x16xf32>, vector<16x96xf32>, vector<16x96xf32> -> vector<16x96xf32>
    %9 = vector.extract_strided_slice %6 {offsets = [0, 0], sizes = [1, 96], strides = [1, 1]} : vector<1x128xf32> to vector<1x96xf32>
    %10 = vector.broadcast %9 : vector<1x96xf32> to vector<16x96xf32>
    %11 = arith.addf %8, %10 : vector<16x96xf32>
    %12 = vector.extract_strided_slice %11 {offsets = [0, 0], sizes = [16, 32], strides = [1, 1]} : vector<16x96xf32> to vector<16x32xf32>
    %13 = vector.extract_strided_slice %11 {offsets = [0, 32], sizes = [16, 32], strides = [1, 1]} : vector<16x96xf32> to vector<16x32xf32>
    %14 = vector.extract_strided_slice %11 {offsets = [0, 64], sizes = [16, 32], strides = [1, 1]} : vector<16x96xf32> to vector<16x32xf32>
    %c0_5 = arith.constant 0 : index
    %c0_6 = arith.constant 0 : index
    %15 = vector.load %arg3[%c0_5, %c0_6] : memref<32x96xf32, #tpu.memory_space<vmem>>, vector<32x96xf32>
    %16 = vector.extract_strided_slice %6 {offsets = [0, 96], sizes = [1, 32], strides = [1, 1]} : vector<1x128xf32> to vector<1x32xf32>
    %17 = vector.shape_cast %16 : vector<1x32xf32> to vector<1x32xf32>
    %18 = vector.broadcast %17 : vector<1x32xf32> to vector<2x32xf32>
    %c0_7 = arith.constant 0 : index
    %c0_8 = arith.constant 0 : index
    %19 = vector.load %arg1[%c0_7, %c0_8] : memref<2x32xf32, #tpu.memory_space<vmem>>, vector<2x32xf32>
    %cst_9 = arith.constant dense<0.000000e+00> : vector<2x96xf32>
    %20 = tpu.matmul %19, %15, %cst_9 {dimension_numbers = #tpu.dot_dimension_numbers<[1], [0], [0], [1], [0, 0, 1, 1], [], []>} : vector<2x32xf32>, vector<32x96xf32>, vector<2x96xf32> -> vector<2x96xf32>
    %21 = vector.extract_strided_slice %12 {offsets = [0, 0], sizes = [2, 32], strides = [1, 1]} : vector<16x32xf32> to vector<2x32xf32>
    %22 = vector.extract_strided_slice %20 {offsets = [0, 0], sizes = [2, 32], strides = [1, 1]} : vector<2x96xf32> to vector<2x32xf32>
    %23 = arith.addf %21, %22 : vector<2x32xf32>
    %24 = arith.negf %23 : vector<2x32xf32>
    %25 = math.exp %24 : vector<2x32xf32>
    %cst_10 = arith.constant 1.000000e+00 : f32
    %26 = vector.broadcast %cst_10 : f32 to vector<2x32xf32>
    %27 = arith.addf %26, %25 : vector<2x32xf32>
    %28 = arith.divf %26, %27 : vector<2x32xf32>
    %29 = vector.extract_strided_slice %13 {offsets = [0, 0], sizes = [2, 32], strides = [1, 1]} : vector<16x32xf32> to vector<2x32xf32>
    %30 = vector.extract_strided_slice %20 {offsets = [0, 32], sizes = [2, 32], strides = [1, 1]} : vector<2x96xf32> to vector<2x32xf32>
    %31 = arith.addf %29, %30 : vector<2x32xf32>
    %32 = arith.negf %31 : vector<2x32xf32>
    %33 = math.exp %32 : vector<2x32xf32>
    %cst_11 = arith.constant 1.000000e+00 : f32
    %34 = vector.broadcast %cst_11 : f32 to vector<2x32xf32>
    %35 = arith.addf %34, %33 : vector<2x32xf32>
    %36 = arith.divf %34, %35 : vector<2x32xf32>
    %37 = vector.extract_strided_slice %14 {offsets = [0, 0], sizes = [2, 32], strides = [1, 1]} : vector<16x32xf32> to vector<2x32xf32>
    %38 = vector.extract_strided_slice %20 {offsets = [0, 64], sizes = [2, 32], strides = [1, 1]} : vector<2x96xf32> to vector<2x32xf32>
    %39 = arith.addf %38, %18 : vector<2x32xf32>
    %40 = arith.mulf %28, %39 : vector<2x32xf32>
    %41 = arith.addf %37, %40 : vector<2x32xf32>
    %42 = math.tanh %41 : vector<2x32xf32>
    %43 = arith.subf %19, %42 : vector<2x32xf32>
    %44 = arith.mulf %36, %43 : vector<2x32xf32>
    %45 = arith.addf %42, %44 : vector<2x32xf32>
    %c0_12 = arith.constant 0 : index
    %c0_13 = arith.constant 0 : index
    %46 = vector.load %arg8[%c0_12, %c0_13] : memref<16x32xf32, #tpu.memory_space<vmem>>, vector<2x32xf32>
    tpu.vector_store %arg8[%c0_12, %c0_13], %45 {strides = array<i32>} : memref<16x32xf32, #tpu.memory_space<vmem>>, vector<2x32xf32>,
    %cst_14 = arith.constant dense<0.000000e+00> : vector<2x96xf32>
    %47 = tpu.matmul %45, %15, %cst_14 {dimension_numbers = #tpu.dot_dimension_numbers<[1], [0], [0], [1], [0, 0, 1, 1], [], []>} : vector<2x32xf32>, vector<32x96xf32>, vector<2x96xf32> -> vector<2x96xf32>
    %48 = vector.extract_strided_slice %12 {offsets = [2, 0], sizes = [2, 32], strides = [1, 1]} : vector<16x32xf32> to vector<2x32xf32>
    %49 = vector.extract_strided_slice %47 {offsets = [0, 0], sizes = [2, 32], strides = [1, 1]} : vector<2x96xf32> to vector<2x32xf32>
    %50 = arith.addf %48, %49 : vector<2x32xf32>
    %51 = arith.negf %50 : vector<2x32xf32>
    %52 = math.exp %51 : vector<2x32xf32>
    %cst_15 = arith.constant 1.000000e+00 : f32
    %53 = vector.broadcast %cst_15 : f32 to vector<2x32xf32>
    %54 = arith.addf %53, %52 : vector<2x32xf32>
    %55 = arith.divf %53, %54 : vector<2x32xf32>
    %56 = vector.extract_strided_slice %13 {offsets = [2, 0], sizes = [2, 32], strides = [1, 1]} : vector<16x32xf32> to vector<2x32xf32>
    %57 = vector.extract_strided_slice %47 {offsets = [0, 32], sizes = [2, 32], strides = [1, 1]} : vector<2x96xf32> to vector<2x32xf32>
    %58 = arith.addf %56, %57 : vector<2x32xf32>
    %59 = arith.negf %58 : vector<2x32xf32>
    %60 = math.exp %59 : vector<2x32xf32>
    %cst_16 = arith.constant 1.000000e+00 : f32
    %61 = vector.broadcast %cst_16 : f32 to vector<2x32xf32>
    %62 = arith.addf %61, %60 : vector<2x32xf32>
    %63 = arith.divf %61, %62 : vector<2x32xf32>
    %64 = vector.extract_strided_slice %14 {offsets = [2, 0], sizes = [2, 32], strides = [1, 1]} : vector<16x32xf32> to vector<2x32xf32>
    %65 = vector.extract_strided_slice %47 {offsets = [0, 64], sizes = [2, 32], strides = [1, 1]} : vector<2x96xf32> to vector<2x32xf32>
    %66 = arith.addf %65, %18 : vector<2x32xf32>
    %67 = arith.mulf %55, %66 : vector<2x32xf32>
    %68 = arith.addf %64, %67 : vector<2x32xf32>
    %69 = math.tanh %68 : vector<2x32xf32>
    %70 = arith.subf %45, %69 : vector<2x32xf32>
    %71 = arith.mulf %63, %70 : vector<2x32xf32>
    %72 = arith.addf %69, %71 : vector<2x32xf32>
    %c2 = arith.constant 2 : index
    %c0_17 = arith.constant 0 : index
    %73 = vector.load %arg8[%c2, %c0_17] : memref<16x32xf32, #tpu.memory_space<vmem>>, vector<2x32xf32>
    tpu.vector_store %arg8[%c2, %c0_17], %72 {strides = array<i32>} : memref<16x32xf32, #tpu.memory_space<vmem>>, vector<2x32xf32>,
    %cst_18 = arith.constant dense<0.000000e+00> : vector<2x96xf32>
    %74 = tpu.matmul %72, %15, %cst_18 {dimension_numbers = #tpu.dot_dimension_numbers<[1], [0], [0], [1], [0, 0, 1, 1], [], []>} : vector<2x32xf32>, vector<32x96xf32>, vector<2x96xf32> -> vector<2x96xf32>
    %75 = vector.extract_strided_slice %12 {offsets = [4, 0], sizes = [2, 32], strides = [1, 1]} : vector<16x32xf32> to vector<2x32xf32>
    %76 = vector.extract_strided_slice %74 {offsets = [0, 0], sizes = [2, 32], strides = [1, 1]} : vector<2x96xf32> to vector<2x32xf32>
    %77 = arith.addf %75, %76 : vector<2x32xf32>
    %78 = arith.negf %77 : vector<2x32xf32>
    %79 = math.exp %78 : vector<2x32xf32>
    %cst_19 = arith.constant 1.000000e+00 : f32
    %80 = vector.broadcast %cst_19 : f32 to vector<2x32xf32>
    %81 = arith.addf %80, %79 : vector<2x32xf32>
    %82 = arith.divf %80, %81 : vector<2x32xf32>
    %83 = vector.extract_strided_slice %13 {offsets = [4, 0], sizes = [2, 32], strides = [1, 1]} : vector<16x32xf32> to vector<2x32xf32>
    %84 = vector.extract_strided_slice %74 {offsets = [0, 32], sizes = [2, 32], strides = [1, 1]} : vector<2x96xf32> to vector<2x32xf32>
    %85 = arith.addf %83, %84 : vector<2x32xf32>
    %86 = arith.negf %85 : vector<2x32xf32>
    %87 = math.exp %86 : vector<2x32xf32>
    %cst_20 = arith.constant 1.000000e+00 : f32
    %88 = vector.broadcast %cst_20 : f32 to vector<2x32xf32>
    %89 = arith.addf %88, %87 : vector<2x32xf32>
    %90 = arith.divf %88, %89 : vector<2x32xf32>
    %91 = vector.extract_strided_slice %14 {offsets = [4, 0], sizes = [2, 32], strides = [1, 1]} : vector<16x32xf32> to vector<2x32xf32>
    %92 = vector.extract_strided_slice %74 {offsets = [0, 64], sizes = [2, 32], strides = [1, 1]} : vector<2x96xf32> to vector<2x32xf32>
    %93 = arith.addf %92, %18 : vector<2x32xf32>
    %94 = arith.mulf %82, %93 : vector<2x32xf32>
    %95 = arith.addf %91, %94 : vector<2x32xf32>
    %96 = math.tanh %95 : vector<2x32xf32>
    %97 = arith.subf %72, %96 : vector<2x32xf32>
    %98 = arith.mulf %90, %97 : vector<2x32xf32>
    %99 = arith.addf %96, %98 : vector<2x32xf32>
    %c4 = arith.constant 4 : index
    %c0_21 = arith.constant 0 : index
    %100 = vector.load %arg8[%c4, %c0_21] : memref<16x32xf32, #tpu.memory_space<vmem>>, vector<2x32xf32>
    tpu.vector_store %arg8[%c4, %c0_21], %99 {strides = array<i32>} : memref<16x32xf32, #tpu.memory_space<vmem>>, vector<2x32xf32>,
    %cst_22 = arith.constant dense<0.000000e+00> : vector<2x96xf32>
    %101 = tpu.matmul %99, %15, %cst_22 {dimension_numbers = #tpu.dot_dimension_numbers<[1], [0], [0], [1], [0, 0, 1, 1], [], []>} : vector<2x32xf32>, vector<32x96xf32>, vector<2x96xf32> -> vector<2x96xf32>
    %102 = vector.extract_strided_slice %12 {offsets = [6, 0], sizes = [2, 32], strides = [1, 1]} : vector<16x32xf32> to vector<2x32xf32>
    %103 = vector.extract_strided_slice %101 {offsets = [0, 0], sizes = [2, 32], strides = [1, 1]} : vector<2x96xf32> to vector<2x32xf32>
    %104 = arith.addf %102, %103 : vector<2x32xf32>
    %105 = arith.negf %104 : vector<2x32xf32>
    %106 = math.exp %105 : vector<2x32xf32>
    %cst_23 = arith.constant 1.000000e+00 : f32
    %107 = vector.broadcast %cst_23 : f32 to vector<2x32xf32>
    %108 = arith.addf %107, %106 : vector<2x32xf32>
    %109 = arith.divf %107, %108 : vector<2x32xf32>
    %110 = vector.extract_strided_slice %13 {offsets = [6, 0], sizes = [2, 32], strides = [1, 1]} : vector<16x32xf32> to vector<2x32xf32>
    %111 = vector.extract_strided_slice %101 {offsets = [0, 32], sizes = [2, 32], strides = [1, 1]} : vector<2x96xf32> to vector<2x32xf32>
    %112 = arith.addf %110, %111 : vector<2x32xf32>
    %113 = arith.negf %112 : vector<2x32xf32>
    %114 = math.exp %113 : vector<2x32xf32>
    %cst_24 = arith.constant 1.000000e+00 : f32
    %115 = vector.broadcast %cst_24 : f32 to vector<2x32xf32>
    %116 = arith.addf %115, %114 : vector<2x32xf32>
    %117 = arith.divf %115, %116 : vector<2x32xf32>
    %118 = vector.extract_strided_slice %14 {offsets = [6, 0], sizes = [2, 32], strides = [1, 1]} : vector<16x32xf32> to vector<2x32xf32>
    %119 = vector.extract_strided_slice %101 {offsets = [0, 64], sizes = [2, 32], strides = [1, 1]} : vector<2x96xf32> to vector<2x32xf32>
    %120 = arith.addf %119, %18 : vector<2x32xf32>
    %121 = arith.mulf %109, %120 : vector<2x32xf32>
    %122 = arith.addf %118, %121 : vector<2x32xf32>
    %123 = math.tanh %122 : vector<2x32xf32>
    %124 = arith.subf %99, %123 : vector<2x32xf32>
    %125 = arith.mulf %117, %124 : vector<2x32xf32>
    %126 = arith.addf %123, %125 : vector<2x32xf32>
    %c6 = arith.constant 6 : index
    %c0_25 = arith.constant 0 : index
    %127 = vector.load %arg8[%c6, %c0_25] : memref<16x32xf32, #tpu.memory_space<vmem>>, vector<2x32xf32>
    tpu.vector_store %arg8[%c6, %c0_25], %126 {strides = array<i32>} : memref<16x32xf32, #tpu.memory_space<vmem>>, vector<2x32xf32>,
    %cst_26 = arith.constant dense<0.000000e+00> : vector<2x96xf32>
    %128 = tpu.matmul %126, %15, %cst_26 {dimension_numbers = #tpu.dot_dimension_numbers<[1], [0], [0], [1], [0, 0, 1, 1], [], []>} : vector<2x32xf32>, vector<32x96xf32>, vector<2x96xf32> -> vector<2x96xf32>
    %129 = vector.extract_strided_slice %12 {offsets = [8, 0], sizes = [2, 32], strides = [1, 1]} : vector<16x32xf32> to vector<2x32xf32>
    %130 = vector.extract_strided_slice %128 {offsets = [0, 0], sizes = [2, 32], strides = [1, 1]} : vector<2x96xf32> to vector<2x32xf32>
    %131 = arith.addf %129, %130 : vector<2x32xf32>
    %132 = arith.negf %131 : vector<2x32xf32>
    %133 = math.exp %132 : vector<2x32xf32>
    %cst_27 = arith.constant 1.000000e+00 : f32
    %134 = vector.broadcast %cst_27 : f32 to vector<2x32xf32>
    %135 = arith.addf %134, %133 : vector<2x32xf32>
    %136 = arith.divf %134, %135 : vector<2x32xf32>
    %137 = vector.extract_strided_slice %13 {offsets = [8, 0], sizes = [2, 32], strides = [1, 1]} : vector<16x32xf32> to vector<2x32xf32>
    %138 = vector.extract_strided_slice %128 {offsets = [0, 32], sizes = [2, 32], strides = [1, 1]} : vector<2x96xf32> to vector<2x32xf32>
    %139 = arith.addf %137, %138 : vector<2x32xf32>
    %140 = arith.negf %139 : vector<2x32xf32>
    %141 = math.exp %140 : vector<2x32xf32>
    %cst_28 = arith.constant 1.000000e+00 : f32
    %142 = vector.broadcast %cst_28 : f32 to vector<2x32xf32>
    %143 = arith.addf %142, %141 : vector<2x32xf32>
    %144 = arith.divf %142, %143 : vector<2x32xf32>
    %145 = vector.extract_strided_slice %14 {offsets = [8, 0], sizes = [2, 32], strides = [1, 1]} : vector<16x32xf32> to vector<2x32xf32>
    %146 = vector.extract_strided_slice %128 {offsets = [0, 64], sizes = [2, 32], strides = [1, 1]} : vector<2x96xf32> to vector<2x32xf32>
    %147 = arith.addf %146, %18 : vector<2x32xf32>
    %148 = arith.mulf %136, %147 : vector<2x32xf32>
    %149 = arith.addf %145, %148 : vector<2x32xf32>
    %150 = math.tanh %149 : vector<2x32xf32>
    %151 = arith.subf %126, %150 : vector<2x32xf32>
    %152 = arith.mulf %144, %151 : vector<2x32xf32>
    %153 = arith.addf %150, %152 : vector<2x32xf32>
    %c8 = arith.constant 8 : index
    %c0_29 = arith.constant 0 : index
    %154 = vector.load %arg8[%c8, %c0_29] : memref<16x32xf32, #tpu.memory_space<vmem>>, vector<2x32xf32>
    tpu.vector_store %arg8[%c8, %c0_29], %153 {strides = array<i32>} : memref<16x32xf32, #tpu.memory_space<vmem>>, vector<2x32xf32>,
    %cst_30 = arith.constant dense<0.000000e+00> : vector<2x96xf32>
    %155 = tpu.matmul %153, %15, %cst_30 {dimension_numbers = #tpu.dot_dimension_numbers<[1], [0], [0], [1], [0, 0, 1, 1], [], []>} : vector<2x32xf32>, vector<32x96xf32>, vector<2x96xf32> -> vector<2x96xf32>
    %156 = vector.extract_strided_slice %12 {offsets = [10, 0], sizes = [2, 32], strides = [1, 1]} : vector<16x32xf32> to vector<2x32xf32>
    %157 = vector.extract_strided_slice %155 {offsets = [0, 0], sizes = [2, 32], strides = [1, 1]} : vector<2x96xf32> to vector<2x32xf32>
    %158 = arith.addf %156, %157 : vector<2x32xf32>
    %159 = arith.negf %158 : vector<2x32xf32>
    %160 = math.exp %159 : vector<2x32xf32>
    %cst_31 = arith.constant 1.000000e+00 : f32
    %161 = vector.broadcast %cst_31 : f32 to vector<2x32xf32>
    %162 = arith.addf %161, %160 : vector<2x32xf32>
    %163 = arith.divf %161, %162 : vector<2x32xf32>
    %164 = vector.extract_strided_slice %13 {offsets = [10, 0], sizes = [2, 32], strides = [1, 1]} : vector<16x32xf32> to vector<2x32xf32>
    %165 = vector.extract_strided_slice %155 {offsets = [0, 32], sizes = [2, 32], strides = [1, 1]} : vector<2x96xf32> to vector<2x32xf32>
    %166 = arith.addf %164, %165 : vector<2x32xf32>
    %167 = arith.negf %166 : vector<2x32xf32>
    %168 = math.exp %167 : vector<2x32xf32>
    %cst_32 = arith.constant 1.000000e+00 : f32
    %169 = vector.broadcast %cst_32 : f32 to vector<2x32xf32>
    %170 = arith.addf %169, %168 : vector<2x32xf32>
    %171 = arith.divf %169, %170 : vector<2x32xf32>
    %172 = vector.extract_strided_slice %14 {offsets = [10, 0], sizes = [2, 32], strides = [1, 1]} : vector<16x32xf32> to vector<2x32xf32>
    %173 = vector.extract_strided_slice %155 {offsets = [0, 64], sizes = [2, 32], strides = [1, 1]} : vector<2x96xf32> to vector<2x32xf32>
    %174 = arith.addf %173, %18 : vector<2x32xf32>
    %175 = arith.mulf %163, %174 : vector<2x32xf32>
    %176 = arith.addf %172, %175 : vector<2x32xf32>
    %177 = math.tanh %176 : vector<2x32xf32>
    %178 = arith.subf %153, %177 : vector<2x32xf32>
    %179 = arith.mulf %171, %178 : vector<2x32xf32>
    %180 = arith.addf %177, %179 : vector<2x32xf32>
    %c10 = arith.constant 10 : index
    %c0_33 = arith.constant 0 : index
    %181 = vector.load %arg8[%c10, %c0_33] : memref<16x32xf32, #tpu.memory_space<vmem>>, vector<2x32xf32>
    tpu.vector_store %arg8[%c10, %c0_33], %180 {strides = array<i32>} : memref<16x32xf32, #tpu.memory_space<vmem>>, vector<2x32xf32>,
    %cst_34 = arith.constant dense<0.000000e+00> : vector<2x96xf32>
    %182 = tpu.matmul %180, %15, %cst_34 {dimension_numbers = #tpu.dot_dimension_numbers<[1], [0], [0], [1], [0, 0, 1, 1], [], []>} : vector<2x32xf32>, vector<32x96xf32>, vector<2x96xf32> -> vector<2x96xf32>
    %183 = vector.extract_strided_slice %12 {offsets = [12, 0], sizes = [2, 32], strides = [1, 1]} : vector<16x32xf32> to vector<2x32xf32>
    %184 = vector.extract_strided_slice %182 {offsets = [0, 0], sizes = [2, 32], strides = [1, 1]} : vector<2x96xf32> to vector<2x32xf32>
    %185 = arith.addf %183, %184 : vector<2x32xf32>
    %186 = arith.negf %185 : vector<2x32xf32>
    %187 = math.exp %186 : vector<2x32xf32>
    %cst_35 = arith.constant 1.000000e+00 : f32
    %188 = vector.broadcast %cst_35 : f32 to vector<2x32xf32>
    %189 = arith.addf %188, %187 : vector<2x32xf32>
    %190 = arith.divf %188, %189 : vector<2x32xf32>
    %191 = vector.extract_strided_slice %13 {offsets = [12, 0], sizes = [2, 32], strides = [1, 1]} : vector<16x32xf32> to vector<2x32xf32>
    %192 = vector.extract_strided_slice %182 {offsets = [0, 32], sizes = [2, 32], strides = [1, 1]} : vector<2x96xf32> to vector<2x32xf32>
    %193 = arith.addf %191, %192 : vector<2x32xf32>
    %194 = arith.negf %193 : vector<2x32xf32>
    %195 = math.exp %194 : vector<2x32xf32>
    %cst_36 = arith.constant 1.000000e+00 : f32
    %196 = vector.broadcast %cst_36 : f32 to vector<2x32xf32>
    %197 = arith.addf %196, %195 : vector<2x32xf32>
    %198 = arith.divf %196, %197 : vector<2x32xf32>
    %199 = vector.extract_strided_slice %14 {offsets = [12, 0], sizes = [2, 32], strides = [1, 1]} : vector<16x32xf32> to vector<2x32xf32>
    %200 = vector.extract_strided_slice %182 {offsets = [0, 64], sizes = [2, 32], strides = [1, 1]} : vector<2x96xf32> to vector<2x32xf32>
    %201 = arith.addf %200, %18 : vector<2x32xf32>
    %202 = arith.mulf %190, %201 : vector<2x32xf32>
    %203 = arith.addf %199, %202 : vector<2x32xf32>
    %204 = math.tanh %203 : vector<2x32xf32>
    %205 = arith.subf %180, %204 : vector<2x32xf32>
    %206 = arith.mulf %198, %205 : vector<2x32xf32>
    %207 = arith.addf %204, %206 : vector<2x32xf32>
    %c12 = arith.constant 12 : index
    %c0_37 = arith.constant 0 : index
    %208 = vector.load %arg8[%c12, %c0_37] : memref<16x32xf32, #tpu.memory_space<vmem>>, vector<2x32xf32>
    tpu.vector_store %arg8[%c12, %c0_37], %207 {strides = array<i32>} : memref<16x32xf32, #tpu.memory_space<vmem>>, vector<2x32xf32>,
    %cst_38 = arith.constant dense<0.000000e+00> : vector<2x96xf32>
    %209 = tpu.matmul %207, %15, %cst_38 {dimension_numbers = #tpu.dot_dimension_numbers<[1], [0], [0], [1], [0, 0, 1, 1], [], []>} : vector<2x32xf32>, vector<32x96xf32>, vector<2x96xf32> -> vector<2x96xf32>
    %210 = vector.extract_strided_slice %12 {offsets = [14, 0], sizes = [2, 32], strides = [1, 1]} : vector<16x32xf32> to vector<2x32xf32>
    %211 = vector.extract_strided_slice %209 {offsets = [0, 0], sizes = [2, 32], strides = [1, 1]} : vector<2x96xf32> to vector<2x32xf32>
    %212 = arith.addf %210, %211 : vector<2x32xf32>
    %213 = arith.negf %212 : vector<2x32xf32>
    %214 = math.exp %213 : vector<2x32xf32>
    %cst_39 = arith.constant 1.000000e+00 : f32
    %215 = vector.broadcast %cst_39 : f32 to vector<2x32xf32>
    %216 = arith.addf %215, %214 : vector<2x32xf32>
    %217 = arith.divf %215, %216 : vector<2x32xf32>
    %218 = vector.extract_strided_slice %13 {offsets = [14, 0], sizes = [2, 32], strides = [1, 1]} : vector<16x32xf32> to vector<2x32xf32>
    %219 = vector.extract_strided_slice %209 {offsets = [0, 32], sizes = [2, 32], strides = [1, 1]} : vector<2x96xf32> to vector<2x32xf32>
    %220 = arith.addf %218, %219 : vector<2x32xf32>
    %221 = arith.negf %220 : vector<2x32xf32>
    %222 = math.exp %221 : vector<2x32xf32>
    %cst_40 = arith.constant 1.000000e+00 : f32
    %223 = vector.broadcast %cst_40 : f32 to vector<2x32xf32>
    %224 = arith.addf %223, %222 : vector<2x32xf32>
    %225 = arith.divf %223, %224 : vector<2x32xf32>
    %226 = vector.extract_strided_slice %14 {offsets = [14, 0], sizes = [2, 32], strides = [1, 1]} : vector<16x32xf32> to vector<2x32xf32>
    %227 = vector.extract_strided_slice %209 {offsets = [0, 64], sizes = [2, 32], strides = [1, 1]} : vector<2x96xf32> to vector<2x32xf32>
    %228 = arith.addf %227, %18 : vector<2x32xf32>
    %229 = arith.mulf %217, %228 : vector<2x32xf32>
    %230 = arith.addf %226, %229 : vector<2x32xf32>
    %231 = math.tanh %230 : vector<2x32xf32>
    %232 = arith.subf %207, %231 : vector<2x32xf32>
    %233 = arith.mulf %225, %232 : vector<2x32xf32>
    %234 = arith.addf %231, %233 : vector<2x32xf32>
    %c14 = arith.constant 14 : index
    %c0_41 = arith.constant 0 : index
    %235 = vector.load %arg8[%c14, %c0_41] : memref<16x32xf32, #tpu.memory_space<vmem>>, vector<2x32xf32>
    tpu.vector_store %arg8[%c14, %c0_41], %234 {strides = array<i32>} : memref<16x32xf32, #tpu.memory_space<vmem>>, vector<2x32xf32>,
    %c0_42 = arith.constant 0 : index
    %c0_43 = arith.constant 0 : index
    %236 = vector.load %arg5[%c0_42, %c0_43] : memref<33x16xf32, #tpu.memory_space<vmem>>, vector<33x16xf32>
    %c0_44 = arith.constant 0 : index
    %c0_45 = arith.constant 0 : index
    %237 = vector.load %arg8[%c0_44, %c0_45] : memref<16x32xf32, #tpu.memory_space<vmem>>, vector<16x32xf32>
    %238 = vector.extract_strided_slice %236 {offsets = [0, 0], sizes = [32, 16], strides = [1, 1]} : vector<33x16xf32> to vector<32x16xf32>
    %cst_46 = arith.constant dense<0.000000e+00> : vector<16x16xf32>
    %239 = tpu.matmul %237, %238, %cst_46 {dimension_numbers = #tpu.dot_dimension_numbers<[1], [0], [0], [1], [0, 0, 1, 1], [], []>} : vector<16x32xf32>, vector<32x16xf32>, vector<16x16xf32> -> vector<16x16xf32>
    %240 = vector.extract_strided_slice %236 {offsets = [32, 0], sizes = [1, 16], strides = [1, 1]} : vector<33x16xf32> to vector<1x16xf32>
    %241 = vector.broadcast %240 : vector<1x16xf32> to vector<16x16xf32>
    %242 = arith.addf %239, %241 : vector<16x16xf32>
    %c0_47 = arith.constant 0 : index
    %c0_48 = arith.constant 0 : index
    %243 = vector.load %arg6[%c0_47, %c0_48] : memref<16x16xf32, #tpu.memory_space<vmem>>, vector<16x16xf32>
    tpu.vector_store %arg6[%c0_47, %c0_48], %242 {strides = array<i32>} : memref<16x16xf32, #tpu.memory_space<vmem>>, vector<16x16xf32>,
    %c0_49 = arith.constant 0 : index
    %c0_50 = arith.constant 0 : index
    %244 = vector.load %arg7[%c0_49, %c0_50] : memref<2x32xf32, #tpu.memory_space<vmem>>, vector<2x32xf32>
    tpu.vector_store %arg7[%c0_49, %c0_50], %234 {strides = array<i32>} : memref<2x32xf32, #tpu.memory_space<vmem>>, vector<2x32xf32>,
    return
  }
}

</mosaic_0001>

<llo_original>
// kernel: tpu_custom_call.1
$region0: #{tpu_custom_call.1}
  #allocation0 [shape = 'u32[]', space=smem, size = 0x4, offset = 0x4, fixed_abs, tag = 'smem constant byte address 0x4 - core index']
  #allocation1 [shape = 'u32[144,128]{1,0:T(1,128)}', space=vmem, size = 0x12000, scoped, tag = 'internal scratch']
  #allocation2 [shape = 'f32[16,32]{1,0:T(8,128)}', space=vmem, size = 0x2000, scoped, tag = 'scratch operand']
  %s0 = inlined_call_operand.vmem [shape: s32[16,1], index: 0, kind: input, shape index: {}]
  %s1 = inlined_call_operand.vmem [shape: f32[2,32], index: 1, kind: input, shape index: {}]
  %s2 = inlined_call_operand.vmem [shape: f32[16,96], index: 2, kind: input, shape index: {}]
  %s3 = inlined_call_operand.vmem [shape: f32[32,96], index: 3, kind: input, shape index: {}]
  %s4 = inlined_call_operand.vmem [shape: f32[1,128], index: 4, kind: input, shape index: {}]
  %s5 = inlined_call_operand.vmem [shape: f32[33,16], index: 5, kind: input, shape index: {}]
  %s6 = inlined_call_operand.hbm [shape: f32[16,16], index: 6, kind: output, shape index: {0}]
  %s7 = inlined_call_operand.hbm [shape: f32[2,32], index: 7, kind: output, shape index: {1}]
  %8 = xla_tuple %s6, %s7
  %s9 = sld [smem:[#allocation0]]
  $region42: #{tpu_custom_call.1} parent=0
    _
  %s11 = ssub.s32 1, %s9
  %s12 = scalar_select 0, %s11, %s9
  $region1: #{tpu_custom_call.1} parent=0
    #allocation3 [shape = 'u8[8192]{0}', space=vmem, size = 0x2000, scoped, tag = 'output window, operand 0, single buffered']
    #allocation4 [shape = 's32[1]{0}', space=sflag, size = 0x4, scoped, tag = 'scoped memory for tpu_custom_call.1']
    #allocation5 [shape = 'u8[1024]{0}', space=vmem, size = 0x400, scoped, tag = 'output window, operand 1, single buffered']
    #allocation6 [shape = 's32[1]{0}', space=sflag, size = 0x4, scoped, tag = 'scoped memory for tpu_custom_call.1']
    %13 = vsyncpa [#allocation4], 0
    %14 = vsyncpa [#allocation6], 0
    // Predicated region
    $region2: #{tpu_custom_call.1} parent=1 // pred_check
      _
    $region3: #{tpu_custom_call.1} parent=1 // pred_check_branch
      %16 = sbr.rel (0) target = $region5
    $region4: #{tpu_custom_call.1} parent=1 // pred_region
      _
    $region5: #{tpu_custom_call.1} parent=1 // pred_fallthru
      _
    // Predicated region
    $region6: #{tpu_custom_call.1} parent=1 // pred_check
      _
    $region7: #{tpu_custom_call.1} parent=1 // pred_check_branch
      %18 = sbr.rel (0) target = $region9
    $region8: #{tpu_custom_call.1} parent=1 // pred_region
      _
    $region9: #{tpu_custom_call.1} parent=1 // pred_fallthru
      _
    // Predicated region
    $region10: #{tpu_custom_call.1} parent=1 // pred_check
      _
    $region11: #{tpu_custom_call.1} parent=1 // pred_check_branch
      %20 = sbr.rel (0) target = $region13
    $region12: #{tpu_custom_call.1} parent=1 // pred_region
      _
    $region13: #{tpu_custom_call.1} parent=1 // pred_fallthru
      _
    // Predicated region
    $region14: #{tpu_custom_call.1} parent=1 // pred_check
      _
    $region15: #{tpu_custom_call.1} parent=1 // pred_check_branch
      %22 = sbr.rel (0) target = $region17
    $region16: #{tpu_custom_call.1} parent=1 // pred_region
      _
    $region17: #{tpu_custom_call.1} parent=1 // pred_fallthru
      _
    // Predicated region
    $region18: #{tpu_custom_call.1} parent=1 // pred_check
      _
    $region19: #{tpu_custom_call.1} parent=1 // pred_check_branch
      %24 = sbr.rel (0) target = $region21
    $region20: #{tpu_custom_call.1} parent=1 // pred_region
      _
    $region21: #{tpu_custom_call.1} parent=1 // pred_fallthru
      _
    // Predicated region
    $region22: #{tpu_custom_call.1} parent=1 // pred_check
      _
    $region23: #{tpu_custom_call.1} parent=1 // pred_check_branch
      %26 = sbr.rel (0) target = $region25
    $region24: #{tpu_custom_call.1} parent=1 // pred_region
      _
    $region25: #{tpu_custom_call.1} parent=1 // pred_fallthru
      _
    %v27 = vld [vmem:[%s0] sm:$0xff]
    %v28 = vld [vmem:[%s0 + $0x8] sm:$0xff]
    %v29 = vlaneseq
    %v30 = vand.u32 %v29, 127
    %31 = vset.pattern.permute.xlu0 0
    %32 = vperm.xlu0 %31, %v27
    %v33 = vpop.permute.xlu0 %32
    %34 = vset.pattern.permute.xlu0 0
    %35 = vperm.xlu0 %34, %v28
    %v36 = vpop.permute.xlu0 %35
    %vm37 = vcmp.eq.s32.totalorder %v30, %v33
    %vm38 = vcmp.eq.s32.totalorder %v30, %v36
    %v39 = vsel %vm37, 1, 0
    %v40 = vsel %vm38, 1, 0
    %v41 = vcvt.s32.f32 %v39
    %v42 = vcvt.s32.f32 %v40
    %v43 = vld [vmem:[%s4] sm:$0x1]
    %v44 = vld [vmem:[%s2] sm:$0xff]
    %v45 = vld [vmem:[%s2 + $0x8] sm:$0xff]
    %v47 = vlaneseq
    %v48 = vshrl.u32 %v47, 7
    %v49 = vsub.s32 0, %v48
    %v50 = vrot.slane %v43, %v49
    %vm52 = vcmask 130048
    %v54 = vsel %vm52, %v41, 0
    %v57 = vsel %vm52, %v42, 0
    %59 = vmatprep.subr.mxu0 0.0
    %60 = vmatpush1.msra.mxu0 0.0
    %61 = vmatprep.subr.mxu0 0.0
    %62 = vmatpush1.msra.mxu0 0.0
    %63 = vmatprep.subr.mxu0 0.0
    %64 = vmatpush1.msra.mxu0 0.0
    %65 = vmatprep.subr.mxu0 0.0
    %66 = vmatpush1.msra.mxu0 0.0
    %67 = vmatprep.subr.mxu0 0.0
    %68 = vmatpush1.msra.mxu0 0.0
    %69 = vmatprep.subr.mxu0 0.0
    %70 = vmatpush1.msra.mxu0 0.0
    %71 = vmatprep.subr.mxu0 0.0
    %72 = vmatpush1.msra.mxu0 0.0
    %73 = vmatprep.subr.mxu0 0.0
    %74 = vmatpush1.msra.mxu0 0.0
    %75 = vmatprep.subr.mxu0 0.0
    %76 = vmatpush1.msra.mxu0 0.0
    %77 = vmatprep.subr.mxu0 0.0
    %78 = vmatpush1.msra.mxu0 0.0
    %79 = vmatprep.subr.mxu0 0.0
    %80 = vmatpush1.msra.mxu0 0.0
    %81 = vmatprep.subr.mxu0 0.0
    %82 = vmatpush1.msra.mxu0 0.0
    %83 = vmatprep.subr.mxu0 0.0
    %84 = vmatpush1.msra.mxu0 0.0
    %85 = vmatprep.subr.mxu0 0.0
    %86 = vmatpush1.msra.mxu0 0.0
    %87 = vmatprep.subr.mxu0 0.0
    %88 = vmatpush1.msra.mxu0 %v45
    %89 = vmatprep.subr.mxu0 0.0
    %90 = vmatpush1.msra.mxu0 %v44
    %91 = vmatprep.subr.mxu0 0.0
    %92 = vmatpush2.msra.mxu0 0.0
    %93 = vmatprep.subr.mxu0 0.0
    %94 = vmatpush2.msra.mxu0 0.0
    %95 = vmatprep.subr.mxu0 0.0
    %96 = vmatpush2.msra.mxu0 0.0
    %97 = vmatprep.subr.mxu0 0.0
    %98 = vmatpush2.msra.mxu0 0.0
    %99 = vmatprep.subr.mxu0 0.0
    %100 = vmatpush2.msra.mxu0 0.0
    %101 = vmatprep.subr.mxu0 0.0
    %102 = vmatpush2.msra.mxu0 0.0
    %103 = vmatprep.subr.mxu0 0.0
    %104 = vmatpush2.msra.mxu0 0.0
    %105 = vmatprep.subr.mxu0 0.0
    %106 = vmatpush2.msra.mxu0 0.0
    %107 = vmatprep.subr.mxu0 0.0
    %108 = vmatpush2.msra.mxu0 0.0
    %109 = vmatprep.subr.mxu0 0.0
    %110 = vmatpush2.msra.mxu0 0.0
    %111 = vmatprep.subr.mxu0 0.0
    %112 = vmatpush2.msra.mxu0 0.0
    %113 = vmatprep.subr.mxu0 0.0
    %114 = vmatpush2.msra.mxu0 0.0
    %115 = vmatprep.subr.mxu0 0.0
    %116 = vmatpush2.msra.mxu0 0.0
    %117 = vmatprep.subr.mxu0 0.0
    %118 = vmatpush2.msra.mxu0 0.0
    %119 = vmatprep.subr.mxu0 0.0
    %120 = vmatpush2.msra.mxu0 0.0
    %121 = vmatprep.subr.mxu0 0.0
    %122 = vmatpush2.msra.mxu0 0.0
    %123 = vmatprep.mubr.f32.mxu0 0.0
    %124 = vmatmul.mubr.f32.gmra.mxu0 %v54
    %v125 = vpop.f32.mrf.mxu0
    %v126 = vadd.f32 %v50, %v125
    %v127 = vpop.f32.mrf.mxu0
    %128 = vmatprep.mubr.f32.mxu0 0.0
    %129 = vmatmul.mubr.f32.gmra.mxu0 %v57
    %v130 = vpop.f32.mrf.mxu0
    %v131 = vadd.f32 %v50, %v130
    %v132 = vpop.f32.mrf.mxu0
    %133 = vdwg.mxu0
    %v134 = vld [vmem:[%s3] sm:$0xff]
    %v135 = vld [vmem:[%s3 + $0x8] sm:$0xff]
    %v136 = vld [vmem:[%s3 + $0x10] sm:$0xff]
    %v137 = vld [vmem:[%s3 + $0x18] sm:$0xff]
    %v138 = vld [vmem:[%s1] sm:$0x3]
    %vm139 = vcmask 261120
    %v141 = vsel %vm139, %v138, 0
    %143 = vmatprep.subr.mxu0 0.0
    %144 = vmatpush1.msra.mxu0 0.0
    %145 = vmatprep.subr.mxu0 0.0
    %146 = vmatpush1.msra.mxu0 0.0
    %147 = vmatprep.subr.mxu0 0.0
    %148 = vmatpush1.msra.mxu0 0.0
    %149 = vmatprep.subr.mxu0 0.0
    %150 = vmatpush1.msra.mxu0 0.0
    %151 = vmatprep.subr.mxu0 0.0
    %152 = vmatpush1.msra.mxu0 0.0
    %153 = vmatprep.subr.mxu0 0.0
    %154 = vmatpush1.msra.mxu0 0.0
    %155 = vmatprep.subr.mxu0 0.0
    %156 = vmatpush1.msra.mxu0 0.0
    %157 = vmatprep.subr.mxu0 0.0
    %158 = vmatpush1.msra.mxu0 0.0
    %159 = vmatprep.subr.mxu0 0.0
    %160 = vmatpush1.msra.mxu0 0.0
    %161 = vmatprep.subr.mxu0 0.0
    %162 = vmatpush1.msra.mxu0 0.0
    %163 = vmatprep.subr.mxu0 0.0
    %164 = vmatpush1.msra.mxu0 0.0
    %165 = vmatprep.subr.mxu0 0.0
    %166 = vmatpush1.msra.mxu0 0.0
    %167 = vmatprep.subr.mxu0 0.0
    %168 = vmatpush1.msra.mxu0 %v137
    %169 = vmatprep.subr.mxu0 0.0
    %170 = vmatpush1.msra.mxu0 %v136
    %171 = vmatprep.subr.mxu0 0.0
    %172 = vmatpush1.msra.mxu0 %v135
    %173 = vmatprep.subr.mxu0 0.0
    %174 = vmatpush1.msra.mxu0 %v134
    %175 = vmatprep.subr.mxu0 0.0
    %176 = vmatpush2.msra.mxu0 0.0
    %177 = vmatprep.subr.mxu0 0.0
    %178 = vmatpush2.msra.mxu0 0.0
    %179 = vmatprep.subr.mxu0 0.0
    %180 = vmatpush2.msra.mxu0 0.0
    %181 = vmatprep.subr.mxu0 0.0
    %182 = vmatpush2.msra.mxu0 0.0
    %183 = vmatprep.subr.mxu0 0.0
    %184 = vmatpush2.msra.mxu0 0.0
    %185 = vmatprep.subr.mxu0 0.0
    %186 = vmatpush2.msra.mxu0 0.0
    %187 = vmatprep.subr.mxu0 0.0
    %188 = vmatpush2.msra.mxu0 0.0
    %189 = vmatprep.subr.mxu0 0.0
    %190 = vmatpush2.msra.mxu0 0.0
    %191 = vmatprep.subr.mxu0 0.0
    %192 = vmatpush2.msra.mxu0 0.0
    %193 = vmatprep.subr.mxu0 0.0
    %194 = vmatpush2.msra.mxu0 0.0
    %195 = vmatprep.subr.mxu0 0.0
    %196 = vmatpush2.msra.mxu0 0.0
    %197 = vmatprep.subr.mxu0 0.0
    %198 = vmatpush2.msra.mxu0 0.0
    %199 = vmatprep.subr.mxu0 0.0
    %200 = vmatpush2.msra.mxu0 0.0
    %201 = vmatprep.subr.mxu0 0.0
    %202 = vmatpush2.msra.mxu0 0.0
    %203 = vmatprep.subr.mxu0 0.0
    %204 = vmatpush2.msra.mxu0 0.0
    %205 = vmatprep.subr.mxu0 0.0
    %206 = vmatpush2.msra.mxu0 0.0
    %207 = vmatprep.mubr.f32.mxu0 0.0
    %208 = vmatmul.mubr.f32.gmra.mxu0 %v141
    %v209 = vpop.f32.mrf.mxu0
    %v210 = vadd.f32 0.0, %v209
    %v211 = vpop.f32.mrf.mxu0
    %212 = vdwg.mxu0
    %v213 = vadd.f32 %v126, %v210
    %v214 = vxor.u32 %v213, 2147483648
    %v215 = vmul.f32 %v214, 1.442695
    %v216 = vpow.pop %v215
    %v217 = vadd.f32 %v216, 1.0
    %v218 = vrcp.pop %v217
    %v219 = vmul.f32 1.0, %v218
    %220 = vrot.lane.b32.xlu0 %v50, 96
    %v221 = vpop.permute.xlu0 %220
    %v223 = vadd.f32 %v210, %v221
    %225 = vrot.lane.b32.xlu0 %v223, 64
    %v226 = vpop.permute.xlu0 %225
    %v228 = vmul.f32 %v219, %v226
    %230 = vrot.lane.b32.xlu0 %v228, 64
    %v231 = vpop.permute.xlu0 %230
    %v233 = vadd.f32 %v126, %v231
    %v234 = vtanh.pop %v233
    %236 = vrot.lane.b32.xlu0 %v234, 64
    %v237 = vpop.permute.xlu0 %236
    %v239 = vsub.f32 %v138, %v237
    %241 = vrot.lane.b32.xlu0 %v239, 32
    %v242 = vpop.permute.xlu0 %241
    %v244 = vmul.f32 %v219, %v242
    %246 = vrot.lane.b32.xlu0 %v244, 32
    %v247 = vpop.permute.xlu0 %246
    %v249 = vadd.f32 %v234, %v247
    %251 = vrot.lane.b32.xlu0 %v249, 64
    %v252 = vpop.permute.xlu0 %251
    %vm254 = vcmask 254976
    %255 = vst.msk [vmem:[#allocation2] sm:$0x3] %vm254, %v252
    %v256 = vsel %vm139, %v252, 0
    %258 = vmatprep.subr.mxu0 0.0
    %259 = vmatpush1.msra.mxu0 0.0
    %260 = vmatprep.subr.mxu0 0.0
    %261 = vmatpush1.msra.mxu0 0.0
    %262 = vmatprep.subr.mxu0 0.0
    %263 = vmatpush1.msra.mxu0 0.0
    %264 = vmatprep.subr.mxu0 0.0
    %265 = vmatpush1.msra.mxu0 0.0
    %266 = vmatprep.subr.mxu0 0.0
    %267 = vmatpush1.msra.mxu0 0.0
    %268 = vmatprep.subr.mxu0 0.0
    %269 = vmatpush1.msra.mxu0 0.0
    %270 = vmatprep.subr.mxu0 0.0
    %271 = vmatpush1.msra.mxu0 0.0
    %272 = vmatprep.subr.mxu0 0.0
    %273 = vmatpush1.msra.mxu0 0.0
    %274 = vmatprep.subr.mxu0 0.0
    %275 = vmatpush1.msra.mxu0 0.0
    %276 = vmatprep.subr.mxu0 0.0
    %277 = vmatpush1.msra.mxu0 0.0
    %278 = vmatprep.subr.mxu0 0.0
    %279 = vmatpush1.msra.mxu0 0.0
    %280 = vmatprep.subr.mxu0 0.0
    %281 = vmatpush1.msra.mxu0 0.0
    %282 = vmatprep.subr.mxu0 0.0
    %283 = vmatpush1.msra.mxu0 %v137
    %284 = vmatprep.subr.mxu0 0.0
    %285 = vmatpush1.msra.mxu0 %v136
    %286 = vmatprep.subr.mxu0 0.0
    %287 = vmatpush1.msra.mxu0 %v135
    %288 = vmatprep.subr.mxu0 0.0
    %289 = vmatpush1.msra.mxu0 %v134
    %290 = vmatprep.subr.mxu0 0.0
    %291 = vmatpush2.msra.mxu0 0.0
    %292 = vmatprep.subr.mxu0 0.0
    %293 = vmatpush2.msra.mxu0 0.0
    %294 = vmatprep.subr.mxu0 0.0
    %295 = vmatpush2.msra.mxu0 0.0
    %296 = vmatprep.subr.mxu0 0.0
    %297 = vmatpush2.msra.mxu0 0.0
    %298 = vmatprep.subr.mxu0 0.0
    %299 = vmatpush2.msra.mxu0 0.0
    %300 = vmatprep.subr.mxu0 0.0
    %301 = vmatpush2.msra.mxu0 0.0
    %302 = vmatprep.subr.mxu0 0.0
    %303 = vmatpush2.msra.mxu0 0.0
    %304 = vmatprep.subr.mxu0 0.0
    %305 = vmatpush2.msra.mxu0 0.0
    %306 = vmatprep.subr.mxu0 0.0
    %307 = vmatpush2.msra.mxu0 0.0
    %308 = vmatprep.subr.mxu0 0.0
    %309 = vmatpush2.msra.mxu0 0.0
    %310 = vmatprep.subr.mxu0 0.0
    %311 = vmatpush2.msra.mxu0 0.0
    %312 = vmatprep.subr.mxu0 0.0
    %313 = vmatpush2.msra.mxu0 0.0
    %314 = vmatprep.subr.mxu0 0.0
    %315 = vmatpush2.msra.mxu0 0.0
    %316 = vmatprep.subr.mxu0 0.0
    %317 = vmatpush2.msra.mxu0 0.0
    %318 = vmatprep.subr.mxu0 0.0
    %319 = vmatpush2.msra.mxu0 0.0
    %320 = vmatprep.subr.mxu0 0.0
    %321 = vmatpush2.msra.mxu0 0.0
    %322 = vmatprep.mubr.f32.mxu0 0.0
    %323 = vmatmul.mubr.f32.gmra.mxu0 %v256
    %v324 = vpop.f32.mrf.mxu0
    %v325 = vadd.f32 0.0, %v324
    %v326 = vpop.f32.mrf.mxu0
    %327 = vdwg.mxu0
    %v329 = vrot.slane %v325, 6
    %v331 = vadd.f32 %v126, %v329
    %v332 = vxor.u32 %v331, 2147483648
    %v333 = vmul.f32 %v332, 1.442695
    %v334 = vpow.pop %v333
    %v335 = vadd.f32 %v334, 1.0
    %v336 = vrcp.pop %v335
    %v337 = vmul.f32 1.0, %v336
    %v338 = vadd.f32 %v325, %v221
    %v340 = vrot.slane %v338, 6
    %341 = vrot.lane.b32.xlu0 %v340, 64
    %v342 = vpop.permute.xlu0 %341
    %v344 = vmul.f32 %v337, %v342
    %346 = vrot.lane.b32.xlu0 %v344, 64
    %v347 = vpop.permute.xlu0 %346
    %v349 = vadd.f32 %v126, %v347
    %v350 = vtanh.pop %v349
    %v352 = vrot.slane %v350, 2
    %v354 = vsub.f32 %v249, %v352
    %v356 = vrot.slane %v354, 6
    %357 = vrot.lane.b32.xlu0 %v356, 96
    %v358 = vpop.permute.xlu0 %357
    %v360 = vmul.f32 %v337, %v358
    %362 = vrot.lane.b32.xlu0 %v360, 32
    %v363 = vpop.permute.xlu0 %362
    %v365 = vadd.f32 %v350, %v363
    %367 = vrot.lane.b32.xlu0 %v365, 64
    %v368 = vpop.permute.xlu0 %367
    %vm370 = vcmask 257026
    %371 = vst.msk [vmem:[#allocation2] sm:$0xc] %vm370, %v368
    %v372 = vrot.slane %v365, 2
    %373 = vrot.lane.b32.xlu0 %v372, 64
    %v374 = vpop.permute.xlu0 %373
    %v375 = vsel %vm139, %v374, 0
    %377 = vmatprep.subr.mxu0 0.0
    %378 = vmatpush1.msra.mxu0 0.0
    %379 = vmatprep.subr.mxu0 0.0
    %380 = vmatpush1.msra.mxu0 0.0
    %381 = vmatprep.subr.mxu0 0.0
    %382 = vmatpush1.msra.mxu0 0.0
    %383 = vmatprep.subr.mxu0 0.0
    %384 = vmatpush1.msra.mxu0 0.0
    %385 = vmatprep.subr.mxu0 0.0
    %386 = vmatpush1.msra.mxu0 0.0
    %387 = vmatprep.subr.mxu0 0.0
    %388 = vmatpush1.msra.mxu0 0.0
    %389 = vmatprep.subr.mxu0 0.0
    %390 = vmatpush1.msra.mxu0 0.0
    %391 = vmatprep.subr.mxu0 0.0
    %392 = vmatpush1.msra.mxu0 0.0
    %393 = vmatprep.subr.mxu0 0.0
    %394 = vmatpush1.msra.mxu0 0.0
    %395 = vmatprep.subr.mxu0 0.0
    %396 = vmatpush1.msra.mxu0 0.0
    %397 = vmatprep.subr.mxu0 0.0
    %398 = vmatpush1.msra.mxu0 0.0
    %399 = vmatprep.subr.mxu0 0.0
    %400 = vmatpush1.msra.mxu0 0.0
    %401 = vmatprep.subr.mxu0 0.0
    %402 = vmatpush1.msra.mxu0 %v137
    %403 = vmatprep.subr.mxu0 0.0
    %404 = vmatpush1.msra.mxu0 %v136
    %405 = vmatprep.subr.mxu0 0.0
    %406 = vmatpush1.msra.mxu0 %v135
    %407 = vmatprep.subr.mxu0 0.0
    %408 = vmatpush1.msra.mxu0 %v134
    %409 = vmatprep.subr.mxu0 0.0
    %410 = vmatpush2.msra.mxu0 0.0
    %411 = vmatprep.subr.mxu0 0.0
    %412 = vmatpush2.msra.mxu0 0.0
    %413 = vmatprep.subr.mxu0 0.0
    %414 = vmatpush2.msra.mxu0 0.0
    %415 = vmatprep.subr.mxu0 0.0
    %416 = vmatpush2.msra.mxu0 0.0
    %417 = vmatprep.subr.mxu0 0.0
    %418 = vmatpush2.msra.mxu0 0.0
    %419 = vmatprep.subr.mxu0 0.0
    %420 = vmatpush2.msra.mxu0 0.0
    %421 = vmatprep.subr.mxu0 0.0
    %422 = vmatpush2.msra.mxu0 0.0
    %423 = vmatprep.subr.mxu0 0.0
    %424 = vmatpush2.msra.mxu0 0.0
    %425 = vmatprep.subr.mxu0 0.0
    %426 = vmatpush2.msra.mxu0 0.0
    %427 = vmatprep.subr.mxu0 0.0
    %428 = vmatpush2.msra.mxu0 0.0
    %429 = vmatprep.subr.mxu0 0.0
    %430 = vmatpush2.msra.mxu0 0.0
    %431 = vmatprep.subr.mxu0 0.0
    %432 = vmatpush2.msra.mxu0 0.0
    %433 = vmatprep.subr.mxu0 0.0
    %434 = vmatpush2.msra.mxu0 0.0
    %435 = vmatprep.subr.mxu0 0.0
    %436 = vmatpush2.msra.mxu0 0.0
    %437 = vmatprep.subr.mxu0 0.0
    %438 = vmatpush2.msra.mxu0 0.0
    %439 = vmatprep.subr.mxu0 0.0
    %440 = vmatpush2.msra.mxu0 0.0
    %441 = vmatprep.mubr.f32.mxu0 0.0
    %442 = vmatmul.mubr.f32.gmra.mxu0 %v375
    %v443 = vpop.f32.mrf.mxu0
    %v444 = vadd.f32 0.0, %v443
    %v445 = vpop.f32.mrf.mxu0
    %446 = vdwg.mxu0
    %v448 = vrot.slane %v444, 4
    %v450 = vadd.f32 %v126, %v448
    %v451 = vxor.u32 %v450, 2147483648
    %v452 = vmul.f32 %v451, 1.442695
    %v453 = vpow.pop %v452
    %v454 = vadd.f32 %v453, 1.0
    %v455 = vrcp.pop %v454
    %v456 = vmul.f32 1.0, %v455
    %v457 = vadd.f32 %v444, %v221
    %v459 = vrot.slane %v457, 4
    %460 = vrot.lane.b32.xlu0 %v459, 64
    %v461 = vpop.permute.xlu0 %460
    %v463 = vmul.f32 %v456, %v461
    %465 = vrot.lane.b32.xlu0 %v463, 64
    %v466 = vpop.permute.xlu0 %465
    %v468 = vadd.f32 %v126, %v466
    %v469 = vtanh.pop %v468
    %v471 = vrot.slane %v469, 2
    %v473 = vsub.f32 %v365, %v471
    %v475 = vrot.slane %v473, 6
    %476 = vrot.lane.b32.xlu0 %v475, 96
    %v477 = vpop.permute.xlu0 %476
    %v479 = vmul.f32 %v456, %v477
    %481 = vrot.lane.b32.xlu0 %v479, 32
    %v482 = vpop.permute.xlu0 %481
    %v484 = vadd.f32 %v469, %v482
    %486 = vrot.lane.b32.xlu0 %v484, 64
    %v487 = vpop.permute.xlu0 %486
    %vm489 = vcmask 259076
    %490 = vst.msk [vmem:[#allocation2] sm:$0x30] %vm489, %v487
    %v491 = vrot.slane %v484, 4
    %492 = vrot.lane.b32.xlu0 %v491, 64
    %v493 = vpop.permute.xlu0 %492
    %v494 = vsel %vm139, %v493, 0
    %496 = vmatprep.subr.mxu0 0.0
    %497 = vmatpush1.msra.mxu0 0.0
    %498 = vmatprep.subr.mxu0 0.0
    %499 = vmatpush1.msra.mxu0 0.0
    %500 = vmatprep.subr.mxu0 0.0
    %501 = vmatpush1.msra.mxu0 0.0
    %502 = vmatprep.subr.mxu0 0.0
    %503 = vmatpush1.msra.mxu0 0.0
    %504 = vmatprep.subr.mxu0 0.0
    %505 = vmatpush1.msra.mxu0 0.0
    %506 = vmatprep.subr.mxu0 0.0
    %507 = vmatpush1.msra.mxu0 0.0
    %508 = vmatprep.subr.mxu0 0.0
    %509 = vmatpush1.msra.mxu0 0.0
    %510 = vmatprep.subr.mxu0 0.0
    %511 = vmatpush1.msra.mxu0 0.0
    %512 = vmatprep.subr.mxu0 0.0
    %513 = vmatpush1.msra.mxu0 0.0
    %514 = vmatprep.subr.mxu0 0.0
    %515 = vmatpush1.msra.mxu0 0.0
    %516 = vmatprep.subr.mxu0 0.0
    %517 = vmatpush1.msra.mxu0 0.0
    %518 = vmatprep.subr.mxu0 0.0
    %519 = vmatpush1.msra.mxu0 0.0
    %520 = vmatprep.subr.mxu0 0.0
    %521 = vmatpush1.msra.mxu0 %v137
    %522 = vmatprep.subr.mxu0 0.0
    %523 = vmatpush1.msra.mxu0 %v136
    %524 = vmatprep.subr.mxu0 0.0
    %525 = vmatpush1.msra.mxu0 %v135
    %526 = vmatprep.subr.mxu0 0.0
    %527 = vmatpush1.msra.mxu0 %v134
    %528 = vmatprep.subr.mxu0 0.0
    %529 = vmatpush2.msra.mxu0 0.0
    %530 = vmatprep.subr.mxu0 0.0
    %531 = vmatpush2.msra.mxu0 0.0
    %532 = vmatprep.subr.mxu0 0.0
    %533 = vmatpush2.msra.mxu0 0.0
    %534 = vmatprep.subr.mxu0 0.0
    %535 = vmatpush2.msra.mxu0 0.0
    %536 = vmatprep.subr.mxu0 0.0
    %537 = vmatpush2.msra.mxu0 0.0
    %538 = vmatprep.subr.mxu0 0.0
    %539 = vmatpush2.msra.mxu0 0.0
    %540 = vmatprep.subr.mxu0 0.0
    %541 = vmatpush2.msra.mxu0 0.0
    %542 = vmatprep.subr.mxu0 0.0
    %543 = vmatpush2.msra.mxu0 0.0
    %544 = vmatprep.subr.mxu0 0.0
    %545 = vmatpush2.msra.mxu0 0.0
    %546 = vmatprep.subr.mxu0 0.0
    %547 = vmatpush2.msra.mxu0 0.0
    %548 = vmatprep.subr.mxu0 0.0
    %549 = vmatpush2.msra.mxu0 0.0
    %550 = vmatprep.subr.mxu0 0.0
    %551 = vmatpush2.msra.mxu0 0.0
    %552 = vmatprep.subr.mxu0 0.0
    %553 = vmatpush2.msra.mxu0 0.0
    %554 = vmatprep.subr.mxu0 0.0
    %555 = vmatpush2.msra.mxu0 0.0
    %556 = vmatprep.subr.mxu0 0.0
    %557 = vmatpush2.msra.mxu0 0.0
    %558 = vmatprep.subr.mxu0 0.0
    %559 = vmatpush2.msra.mxu0 0.0
    %560 = vmatprep.mubr.f32.mxu0 0.0
    %561 = vmatmul.mubr.f32.gmra.mxu0 %v494
    %v562 = vpop.f32.mrf.mxu0
    %v563 = vadd.f32 0.0, %v562
    %v564 = vpop.f32.mrf.mxu0
    %565 = vdwg.mxu0
    %v567 = vrot.slane %v563, 2
    %v569 = vadd.f32 %v126, %v567
    %v570 = vxor.u32 %v569, 2147483648
    %v571 = vmul.f32 %v570, 1.442695
    %v572 = vpow.pop %v571
    %v573 = vadd.f32 %v572, 1.0
    %v574 = vrcp.pop %v573
    %v575 = vmul.f32 1.0, %v574
    %v576 = vadd.f32 %v563, %v221
    %v578 = vrot.slane %v576, 2
    %579 = vrot.lane.b32.xlu0 %v578, 64
    %v580 = vpop.permute.xlu0 %579
    %v582 = vmul.f32 %v575, %v580
    %584 = vrot.lane.b32.xlu0 %v582, 64
    %v585 = vpop.permute.xlu0 %584
    %v587 = vadd.f32 %v126, %v585
    %v588 = vtanh.pop %v587
    %v590 = vrot.slane %v588, 2
    %v592 = vsub.f32 %v484, %v590
    %v594 = vrot.slane %v592, 6
    %595 = vrot.lane.b32.xlu0 %v594, 96
    %v596 = vpop.permute.xlu0 %595
    %v598 = vmul.f32 %v575, %v596
    %600 = vrot.lane.b32.xlu0 %v598, 32
    %v601 = vpop.permute.xlu0 %600
    %v603 = vadd.f32 %v588, %v601
    %605 = vrot.lane.b32.xlu0 %v603, 64
    %v606 = vpop.permute.xlu0 %605
    %vm608 = vcmask 261126
    %609 = vst.msk [vmem:[#allocation2] sm:$0xc0] %vm608, %v606
    %v610 = vrot.slane %v603, 6
    %611 = vrot.lane.b32.xlu0 %v610, 64
    %v612 = vpop.permute.xlu0 %611
    %v613 = vsel %vm139, %v612, 0
    %615 = vmatprep.subr.mxu0 0.0
    %616 = vmatpush1.msra.mxu0 0.0
    %617 = vmatprep.subr.mxu0 0.0
    %618 = vmatpush1.msra.mxu0 0.0
    %619 = vmatprep.subr.mxu0 0.0
    %620 = vmatpush1.msra.mxu0 0.0
    %621 = vmatprep.subr.mxu0 0.0
    %622 = vmatpush1.msra.mxu0 0.0
    %623 = vmatprep.subr.mxu0 0.0
    %624 = vmatpush1.msra.mxu0 0.0
    %625 = vmatprep.subr.mxu0 0.0
    %626 = vmatpush1.msra.mxu0 0.0
    %627 = vmatprep.subr.mxu0 0.0
    %628 = vmatpush1.msra.mxu0 0.0
    %629 = vmatprep.subr.mxu0 0.0
    %630 = vmatpush1.msra.mxu0 0.0
    %631 = vmatprep.subr.mxu0 0.0
    %632 = vmatpush1.msra.mxu0 0.0
    %633 = vmatprep.subr.mxu0 0.0
    %634 = vmatpush1.msra.mxu0 0.0
    %635 = vmatprep.subr.mxu0 0.0
    %636 = vmatpush1.msra.mxu0 0.0
    %637 = vmatprep.subr.mxu0 0.0
    %638 = vmatpush1.msra.mxu0 0.0
    %639 = vmatprep.subr.mxu0 0.0
    %640 = vmatpush1.msra.mxu0 %v137
    %641 = vmatprep.subr.mxu0 0.0
    %642 = vmatpush1.msra.mxu0 %v136
    %643 = vmatprep.subr.mxu0 0.0
    %644 = vmatpush1.msra.mxu0 %v135
    %645 = vmatprep.subr.mxu0 0.0
    %646 = vmatpush1.msra.mxu0 %v134
    %647 = vmatprep.subr.mxu0 0.0
    %648 = vmatpush2.msra.mxu0 0.0
    %649 = vmatprep.subr.mxu0 0.0
    %650 = vmatpush2.msra.mxu0 0.0
    %651 = vmatprep.subr.mxu0 0.0
    %652 = vmatpush2.msra.mxu0 0.0
    %653 = vmatprep.subr.mxu0 0.0
    %654 = vmatpush2.msra.mxu0 0.0
    %655 = vmatprep.subr.mxu0 0.0
    %656 = vmatpush2.msra.mxu0 0.0
    %657 = vmatprep.subr.mxu0 0.0
    %658 = vmatpush2.msra.mxu0 0.0
    %659 = vmatprep.subr.mxu0 0.0
    %660 = vmatpush2.msra.mxu0 0.0
    %661 = vmatprep.subr.mxu0 0.0
    %662 = vmatpush2.msra.mxu0 0.0
    %663 = vmatprep.subr.mxu0 0.0
    %664 = vmatpush2.msra.mxu0 0.0
    %665 = vmatprep.subr.mxu0 0.0
    %666 = vmatpush2.msra.mxu0 0.0
    %667 = vmatprep.subr.mxu0 0.0
    %668 = vmatpush2.msra.mxu0 0.0
    %669 = vmatprep.subr.mxu0 0.0
    %670 = vmatpush2.msra.mxu0 0.0
    %671 = vmatprep.subr.mxu0 0.0
    %672 = vmatpush2.msra.mxu0 0.0
    %673 = vmatprep.subr.mxu0 0.0
    %674 = vmatpush2.msra.mxu0 0.0
    %675 = vmatprep.subr.mxu0 0.0
    %676 = vmatpush2.msra.mxu0 0.0
    %677 = vmatprep.subr.mxu0 0.0
    %678 = vmatpush2.msra.mxu0 0.0
    %679 = vmatprep.mubr.f32.mxu0 0.0
    %680 = vmatmul.mubr.f32.gmra.mxu0 %v613
    %v681 = vpop.f32.mrf.mxu0
    %v682 = vadd.f32 0.0, %v681
    %v683 = vpop.f32.mrf.mxu0
    %684 = vdwg.mxu0
    %v685 = vadd.f32 %v131, %v682
    %v686 = vxor.u32 %v685, 2147483648
    %v687 = vmul.f32 %v686, 1.442695
    %v688 = vpow.pop %v687
    %v689 = vadd.f32 %v688, 1.0
    %v690 = vrcp.pop %v689
    %v691 = vmul.f32 1.0, %v690
    %v692 = vadd.f32 %v682, %v221
    %694 = vrot.lane.b32.xlu0 %v692, 64
    %v695 = vpop.permute.xlu0 %694
    %v697 = vmul.f32 %v691, %v695
    %699 = vrot.lane.b32.xlu0 %v697, 64
    %v700 = vpop.permute.xlu0 %699
    %v702 = vadd.f32 %v131, %v700
    %v703 = vtanh.pop %v702
    %v705 = vrot.slane %v703, 2
    %v707 = vsub.f32 %v603, %v705
    %v709 = vrot.slane %v707, 6
    %710 = vrot.lane.b32.xlu0 %v709, 96
    %v711 = vpop.permute.xlu0 %710
    %v713 = vmul.f32 %v691, %v711
    %715 = vrot.lane.b32.xlu0 %v713, 32
    %v716 = vpop.permute.xlu0 %715
    %v718 = vadd.f32 %v703, %v716
    %720 = vrot.lane.b32.xlu0 %v718, 64
    %v721 = vpop.permute.xlu0 %720
    %723 = vst.msk [vmem:[#allocation2 + $0x8] sm:$0x3] %vm254, %v721
    %v724 = vsel %vm139, %v721, 0
    %726 = vmatprep.subr.mxu0 0.0
    %727 = vmatpush1.msra.mxu0 0.0
    %728 = vmatprep.subr.mxu0 0.0
    %729 = vmatpush1.msra.mxu0 0.0
    %730 = vmatprep.subr.mxu0 0.0
    %731 = vmatpush1.msra.mxu0 0.0
    %732 = vmatprep.subr.mxu0 0.0
    %733 = vmatpush1.msra.mxu0 0.0
    %734 = vmatprep.subr.mxu0 0.0
    %735 = vmatpush1.msra.mxu0 0.0
    %736 = vmatprep.subr.mxu0 0.0
    %737 = vmatpush1.msra.mxu0 0.0
    %738 = vmatprep.subr.mxu0 0.0
    %739 = vmatpush1.msra.mxu0 0.0
    %740 = vmatprep.subr.mxu0 0.0
    %741 = vmatpush1.msra.mxu0 0.0
    %742 = vmatprep.subr.mxu0 0.0
    %743 = vmatpush1.msra.mxu0 0.0
    %744 = vmatprep.subr.mxu0 0.0
    %745 = vmatpush1.msra.mxu0 0.0
    %746 = vmatprep.subr.mxu0 0.0
    %747 = vmatpush1.msra.mxu0 0.0
    %748 = vmatprep.subr.mxu0 0.0
    %749 = vmatpush1.msra.mxu0 0.0
    %750 = vmatprep.subr.mxu0 0.0
    %751 = vmatpush1.msra.mxu0 %v137
    %752 = vmatprep.subr.mxu0 0.0
    %753 = vmatpush1.msra.mxu0 %v136
    %754 = vmatprep.subr.mxu0 0.0
    %755 = vmatpush1.msra.mxu0 %v135
    %756 = vmatprep.subr.mxu0 0.0
    %757 = vmatpush1.msra.mxu0 %v134
    %758 = vmatprep.subr.mxu0 0.0
    %759 = vmatpush2.msra.mxu0 0.0
    %760 = vmatprep.subr.mxu0 0.0
    %761 = vmatpush2.msra.mxu0 0.0
    %762 = vmatprep.subr.mxu0 0.0
    %763 = vmatpush2.msra.mxu0 0.0
    %764 = vmatprep.subr.mxu0 0.0
    %765 = vmatpush2.msra.mxu0 0.0
    %766 = vmatprep.subr.mxu0 0.0
    %767 = vmatpush2.msra.mxu0 0.0
    %768 = vmatprep.subr.mxu0 0.0
    %769 = vmatpush2.msra.mxu0 0.0
    %770 = vmatprep.subr.mxu0 0.0
    %771 = vmatpush2.msra.mxu0 0.0
    %772 = vmatprep.subr.mxu0 0.0
    %773 = vmatpush2.msra.mxu0 0.0
    %774 = vmatprep.subr.mxu0 0.0
    %775 = vmatpush2.msra.mxu0 0.0
    %776 = vmatprep.subr.mxu0 0.0
    %777 = vmatpush2.msra.mxu0 0.0
    %778 = vmatprep.subr.mxu0 0.0
    %779 = vmatpush2.msra.mxu0 0.0
    %780 = vmatprep.subr.mxu0 0.0
    %781 = vmatpush2.msra.mxu0 0.0
    %782 = vmatprep.subr.mxu0 0.0
    %783 = vmatpush2.msra.mxu0 0.0
    %784 = vmatprep.subr.mxu0 0.0
    %785 = vmatpush2.msra.mxu0 0.0
    %786 = vmatprep.subr.mxu0 0.0
    %787 = vmatpush2.msra.mxu0 0.0
    %788 = vmatprep.subr.mxu0 0.0
    %789 = vmatpush2.msra.mxu0 0.0
    %790 = vmatprep.mubr.f32.mxu0 0.0
    %791 = vmatmul.mubr.f32.gmra.mxu0 %v724
    %v792 = vpop.f32.mrf.mxu0
    %v793 = vadd.f32 0.0, %v792
    %v794 = vpop.f32.mrf.mxu0
    %795 = vdwg.mxu0
    %v797 = vrot.slane %v793, 6
    %v799 = vadd.f32 %v131, %v797
    %v800 = vxor.u32 %v799, 2147483648
    %v801 = vmul.f32 %v800, 1.442695
    %v802 = vpow.pop %v801
    %v803 = vadd.f32 %v802, 1.0
    %v804 = vrcp.pop %v803
    %v805 = vmul.f32 1.0, %v804
    %v806 = vadd.f32 %v793, %v221
    %v808 = vrot.slane %v806, 6
    %809 = vrot.lane.b32.xlu0 %v808, 64
    %v810 = vpop.permute.xlu0 %809
    %v812 = vmul.f32 %v805, %v810
    %814 = vrot.lane.b32.xlu0 %v812, 64
    %v815 = vpop.permute.xlu0 %814
    %v817 = vadd.f32 %v131, %v815
    %v818 = vtanh.pop %v817
    %v820 = vrot.slane %v818, 2
    %v822 = vsub.f32 %v718, %v820
    %v824 = vrot.slane %v822, 6
    %825 = vrot.lane.b32.xlu0 %v824, 96
    %v826 = vpop.permute.xlu0 %825
    %v828 = vmul.f32 %v805, %v826
    %830 = vrot.lane.b32.xlu0 %v828, 32
    %v831 = vpop.permute.xlu0 %830
    %v833 = vadd.f32 %v818, %v831
    %835 = vrot.lane.b32.xlu0 %v833, 64
    %v836 = vpop.permute.xlu0 %835
    %838 = vst.msk [vmem:[#allocation2 + $0x8] sm:$0xc] %vm370, %v836
    %v839 = vrot.slane %v833, 2
    %840 = vrot.lane.b32.xlu0 %v839, 64
    %v841 = vpop.permute.xlu0 %840
    %v842 = vsel %vm139, %v841, 0
    %844 = vmatprep.subr.mxu0 0.0
    %845 = vmatpush1.msra.mxu0 0.0
    %846 = vmatprep.subr.mxu0 0.0
    %847 = vmatpush1.msra.mxu0 0.0
    %848 = vmatprep.subr.mxu0 0.0
    %849 = vmatpush1.msra.mxu0 0.0
    %850 = vmatprep.subr.mxu0 0.0
    %851 = vmatpush1.msra.mxu0 0.0
    %852 = vmatprep.subr.mxu0 0.0
    %853 = vmatpush1.msra.mxu0 0.0
    %854 = vmatprep.subr.mxu0 0.0
    %855 = vmatpush1.msra.mxu0 0.0
    %856 = vmatprep.subr.mxu0 0.0
    %857 = vmatpush1.msra.mxu0 0.0
    %858 = vmatprep.subr.mxu0 0.0
    %859 = vmatpush1.msra.mxu0 0.0
    %860 = vmatprep.subr.mxu0 0.0
    %861 = vmatpush1.msra.mxu0 0.0
    %862 = vmatprep.subr.mxu0 0.0
    %863 = vmatpush1.msra.mxu0 0.0
    %864 = vmatprep.subr.mxu0 0.0
    %865 = vmatpush1.msra.mxu0 0.0
    %866 = vmatprep.subr.mxu0 0.0
    %867 = vmatpush1.msra.mxu0 0.0
    %868 = vmatprep.subr.mxu0 0.0
    %869 = vmatpush1.msra.mxu0 %v137
    %870 = vmatprep.subr.mxu0 0.0
    %871 = vmatpush1.msra.mxu0 %v136
    %872 = vmatprep.subr.mxu0 0.0
    %873 = vmatpush1.msra.mxu0 %v135
    %874 = vmatprep.subr.mxu0 0.0
    %875 = vmatpush1.msra.mxu0 %v134
    %876 = vmatprep.subr.mxu0 0.0
    %877 = vmatpush2.msra.mxu0 0.0
    %878 = vmatprep.subr.mxu0 0.0
    %879 = vmatpush2.msra.mxu0 0.0
    %880 = vmatprep.subr.mxu0 0.0
    %881 = vmatpush2.msra.mxu0 0.0
    %882 = vmatprep.subr.mxu0 0.0
    %883 = vmatpush2.msra.mxu0 0.0
    %884 = vmatprep.subr.mxu0 0.0
    %885 = vmatpush2.msra.mxu0 0.0
    %886 = vmatprep.subr.mxu0 0.0
    %887 = vmatpush2.msra.mxu0 0.0
    %888 = vmatprep.subr.mxu0 0.0
    %889 = vmatpush2.msra.mxu0 0.0
    %890 = vmatprep.subr.mxu0 0.0
    %891 = vmatpush2.msra.mxu0 0.0
    %892 = vmatprep.subr.mxu0 0.0
    %893 = vmatpush2.msra.mxu0 0.0
    %894 = vmatprep.subr.mxu0 0.0
    %895 = vmatpush2.msra.mxu0 0.0
    %896 = vmatprep.subr.mxu0 0.0
    %897 = vmatpush2.msra.mxu0 0.0
    %898 = vmatprep.subr.mxu0 0.0
    %899 = vmatpush2.msra.mxu0 0.0
    %900 = vmatprep.subr.mxu0 0.0
    %901 = vmatpush2.msra.mxu0 0.0
    %902 = vmatprep.subr.mxu0 0.0
    %903 = vmatpush2.msra.mxu0 0.0
    %904 = vmatprep.subr.mxu0 0.0
    %905 = vmatpush2.msra.mxu0 0.0
    %906 = vmatprep.subr.mxu0 0.0
    %907 = vmatpush2.msra.mxu0 0.0
    %908 = vmatprep.mubr.f32.mxu0 0.0
    %909 = vmatmul.mubr.f32.gmra.mxu0 %v842
    %v910 = vpop.f32.mrf.mxu0
    %v911 = vadd.f32 0.0, %v910
    %v912 = vpop.f32.mrf.mxu0
    %913 = vdwg.mxu0
    %v915 = vrot.slane %v911, 4
    %v917 = vadd.f32 %v131, %v915
    %v918 = vxor.u32 %v917, 2147483648
    %v919 = vmul.f32 %v918, 1.442695
    %v920 = vpow.pop %v919
    %v921 = vadd.f32 %v920, 1.0
    %v922 = vrcp.pop %v921
    %v923 = vmul.f32 1.0, %v922
    %v924 = vadd.f32 %v911, %v221
    %v926 = vrot.slane %v924, 4
    %927 = vrot.lane.b32.xlu0 %v926, 64
    %v928 = vpop.permute.xlu0 %927
    %v930 = vmul.f32 %v923, %v928
    %932 = vrot.lane.b32.xlu0 %v930, 64
    %v933 = vpop.permute.xlu0 %932
    %v935 = vadd.f32 %v131, %v933
    %v936 = vtanh.pop %v935
    %v938 = vrot.slane %v936, 2
    %v940 = vsub.f32 %v833, %v938
    %v942 = vrot.slane %v940, 6
    %943 = vrot.lane.b32.xlu0 %v942, 96
    %v944 = vpop.permute.xlu0 %943
    %v946 = vmul.f32 %v923, %v944
    %948 = vrot.lane.b32.xlu0 %v946, 32
    %v949 = vpop.permute.xlu0 %948
    %v951 = vadd.f32 %v936, %v949
    %953 = vrot.lane.b32.xlu0 %v951, 64
    %v954 = vpop.permute.xlu0 %953
    %956 = vst.msk [vmem:[#allocation2 + $0x8] sm:$0x30] %vm489, %v954
    %v957 = vrot.slane %v951, 4
    %958 = vrot.lane.b32.xlu0 %v957, 64
    %v959 = vpop.permute.xlu0 %958
    %v960 = vsel %vm139, %v959, 0
    %962 = vmatprep.subr.mxu0 0.0
    %963 = vmatpush1.msra.mxu0 0.0
    %964 = vmatprep.subr.mxu0 0.0
    %965 = vmatpush1.msra.mxu0 0.0
    %966 = vmatprep.subr.mxu0 0.0
    %967 = vmatpush1.msra.mxu0 0.0
    %968 = vmatprep.subr.mxu0 0.0
    %969 = vmatpush1.msra.mxu0 0.0
    %970 = vmatprep.subr.mxu0 0.0
    %971 = vmatpush1.msra.mxu0 0.0
    %972 = vmatprep.subr.mxu0 0.0
    %973 = vmatpush1.msra.mxu0 0.0
    %974 = vmatprep.subr.mxu0 0.0
    %975 = vmatpush1.msra.mxu0 0.0
    %976 = vmatprep.subr.mxu0 0.0
    %977 = vmatpush1.msra.mxu0 0.0
    %978 = vmatprep.subr.mxu0 0.0
    %979 = vmatpush1.msra.mxu0 0.0
    %980 = vmatprep.subr.mxu0 0.0
    %981 = vmatpush1.msra.mxu0 0.0
    %982 = vmatprep.subr.mxu0 0.0
    %983 = vmatpush1.msra.mxu0 0.0
    %984 = vmatprep.subr.mxu0 0.0
    %985 = vmatpush1.msra.mxu0 0.0
    %986 = vmatprep.subr.mxu0 0.0
    %987 = vmatpush1.msra.mxu0 %v137
    %988 = vmatprep.subr.mxu0 0.0
    %989 = vmatpush1.msra.mxu0 %v136
    %990 = vmatprep.subr.mxu0 0.0
    %991 = vmatpush1.msra.mxu0 %v135
    %992 = vmatprep.subr.mxu0 0.0
    %993 = vmatpush1.msra.mxu0 %v134
    %994 = vmatprep.subr.mxu0 0.0
    %995 = vmatpush2.msra.mxu0 0.0
    %996 = vmatprep.subr.mxu0 0.0
    %997 = vmatpush2.msra.mxu0 0.0
    %998 = vmatprep.subr.mxu0 0.0
    %999 = vmatpush2.msra.mxu0 0.0
    %1000 = vmatprep.subr.mxu0 0.0
    %1001 = vmatpush2.msra.mxu0 0.0
    %1002 = vmatprep.subr.mxu0 0.0
    %1003 = vmatpush2.msra.mxu0 0.0
    %1004 = vmatprep.subr.mxu0 0.0
    %1005 = vmatpush2.msra.mxu0 0.0
    %1006 = vmatprep.subr.mxu0 0.0
    %1007 = vmatpush2.msra.mxu0 0.0
    %1008 = vmatprep.subr.mxu0 0.0
    %1009 = vmatpush2.msra.mxu0 0.0
    %1010 = vmatprep.subr.mxu0 0.0
    %1011 = vmatpush2.msra.mxu0 0.0
    %1012 = vmatprep.subr.mxu0 0.0
    %1013 = vmatpush2.msra.mxu0 0.0
    %1014 = vmatprep.subr.mxu0 0.0
    %1015 = vmatpush2.msra.mxu0 0.0
    %1016 = vmatprep.subr.mxu0 0.0
    %1017 = vmatpush2.msra.mxu0 0.0
    %1018 = vmatprep.subr.mxu0 0.0
    %1019 = vmatpush2.msra.mxu0 0.0
    %1020 = vmatprep.subr.mxu0 0.0
    %1021 = vmatpush2.msra.mxu0 0.0
    %1022 = vmatprep.subr.mxu0 0.0
    %1023 = vmatpush2.msra.mxu0 0.0
    %1024 = vmatprep.subr.mxu0 0.0
    %1025 = vmatpush2.msra.mxu0 0.0
    %1026 = vmatprep.mubr.f32.mxu0 0.0
    %1027 = vmatmul.mubr.f32.gmra.mxu0 %v960
    %v1028 = vpop.f32.mrf.mxu0
    %v1029 = vadd.f32 0.0, %v1028
    %v1030 = vpop.f32.mrf.mxu0
    %1031 = vdwg.mxu0
    %v1033 = vrot.slane %v1029, 2
    %v1035 = vadd.f32 %v131, %v1033
    %v1036 = vxor.u32 %v1035, 2147483648
    %v1037 = vmul.f32 %v1036, 1.442695
    %v1038 = vpow.pop %v1037
    %v1039 = vadd.f32 %v1038, 1.0
    %v1040 = vrcp.pop %v1039
    %v1041 = vmul.f32 1.0, %v1040
    %v1042 = vadd.f32 %v1029, %v221
    %v1044 = vrot.slane %v1042, 2
    %1045 = vrot.lane.b32.xlu0 %v1044, 64
    %v1046 = vpop.permute.xlu0 %1045
    %v1048 = vmul.f32 %v1041, %v1046
    %1050 = vrot.lane.b32.xlu0 %v1048, 64
    %v1051 = vpop.permute.xlu0 %1050
    %v1053 = vadd.f32 %v131, %v1051
    %v1054 = vtanh.pop %v1053
    %v1056 = vrot.slane %v1054, 2
    %v1058 = vsub.f32 %v951, %v1056
    %v1060 = vrot.slane %v1058, 6
    %1061 = vrot.lane.b32.xlu0 %v1060, 96
    %v1062 = vpop.permute.xlu0 %1061
    %v1064 = vmul.f32 %v1041, %v1062
    %1066 = vrot.lane.b32.xlu0 %v1064, 32
    %v1067 = vpop.permute.xlu0 %1066
    %v1069 = vadd.f32 %v1054, %v1067
    %1071 = vrot.lane.b32.xlu0 %v1069, 64
    %v1072 = vpop.permute.xlu0 %1071
    %1074 = vst.msk [vmem:[#allocation2 + $0x8] sm:$0xc0] %vm608, %v1072
    %v1075 = vld [vmem:[%s5] sm:$0xff]
    %v1076 = vld [vmem:[%s5 + $0x8] sm:$0xff]
    %v1077 = vld [vmem:[%s5 + $0x10] sm:$0xff]
    %v1078 = vld [vmem:[%s5 + $0x18] sm:$0xff]
    %v1079 = vld [vmem:[%s5 + $0x20] sm:$0x1]
    %v1080 = vld [vmem:[#allocation2] sm:$0xff]
    %v1081 = vld [vmem:[#allocation2 + $0x8] sm:$0xff]
    %v1082 = vlaneseq
    %v1083 = vshrl.u32 %v1082, 7
    %v1084 = vsub.s32 0, %v1083
    %v1085 = vrot.slane %v1079, %v1084
    %v1087 = vsel %vm139, %v1080, 0
    %v1090 = vsel %vm139, %v1081, 0
    %1092 = vmatprep.subr.mxu0 0.0
    %1093 = vmatpush1.msra.mxu0 0.0
    %1094 = vmatprep.subr.mxu0 0.0
    %1095 = vmatpush1.msra.mxu0 0.0
    %1096 = vmatprep.subr.mxu0 0.0
    %1097 = vmatpush1.msra.mxu0 0.0
    %1098 = vmatprep.subr.mxu0 0.0
    %1099 = vmatpush1.msra.mxu0 0.0
    %1100 = vmatprep.subr.mxu0 0.0
    %1101 = vmatpush1.msra.mxu0 0.0
    %1102 = vmatprep.subr.mxu0 0.0
    %1103 = vmatpush1.msra.mxu0 0.0
    %1104 = vmatprep.subr.mxu0 0.0
    %1105 = vmatpush1.msra.mxu0 0.0
    %1106 = vmatprep.subr.mxu0 0.0
    %1107 = vmatpush1.msra.mxu0 0.0
    %1108 = vmatprep.subr.mxu0 0.0
    %1109 = vmatpush1.msra.mxu0 0.0
    %1110 = vmatprep.subr.mxu0 0.0
    %1111 = vmatpush1.msra.mxu0 0.0
    %1112 = vmatprep.subr.mxu0 0.0
    %1113 = vmatpush1.msra.mxu0 0.0
    %1114 = vmatprep.subr.mxu0 0.0
    %1115 = vmatpush1.msra.mxu0 0.0
    %1116 = vmatprep.subr.mxu0 0.0
    %1117 = vmatpush1.msra.mxu0 %v1078
    %1118 = vmatprep.subr.mxu0 0.0
    %1119 = vmatpush1.msra.mxu0 %v1077
    %1120 = vmatprep.subr.mxu0 0.0
    %1121 = vmatpush1.msra.mxu0 %v1076
    %1122 = vmatprep.subr.mxu0 0.0
    %1123 = vmatpush1.msra.mxu0 %v1075
    %1124 = vmatprep.subr.mxu0 0.0
    %1125 = vmatpush2.msra.mxu0 0.0
    %1126 = vmatprep.subr.mxu0 0.0
    %1127 = vmatpush2.msra.mxu0 0.0
    %1128 = vmatprep.subr.mxu0 0.0
    %1129 = vmatpush2.msra.mxu0 0.0
    %1130 = vmatprep.subr.mxu0 0.0
    %1131 = vmatpush2.msra.mxu0 0.0
    %1132 = vmatprep.subr.mxu0 0.0
    %1133 = vmatpush2.msra.mxu0 0.0
    %1134 = vmatprep.subr.mxu0 0.0
    %1135 = vmatpush2.msra.mxu0 0.0
    %1136 = vmatprep.subr.mxu0 0.0
    %1137 = vmatpush2.msra.mxu0 0.0
    %1138 = vmatprep.subr.mxu0 0.0
    %1139 = vmatpush2.msra.mxu0 0.0
    %1140 = vmatprep.subr.mxu0 0.0
    %1141 = vmatpush2.msra.mxu0 0.0
    %1142 = vmatprep.subr.mxu0 0.0
    %1143 = vmatpush2.msra.mxu0 0.0
    %1144 = vmatprep.subr.mxu0 0.0
    %1145 = vmatpush2.msra.mxu0 0.0
    %1146 = vmatprep.subr.mxu0 0.0
    %1147 = vmatpush2.msra.mxu0 0.0
    %1148 = vmatprep.subr.mxu0 0.0
    %1149 = vmatpush2.msra.mxu0 0.0
    %1150 = vmatprep.subr.mxu0 0.0
    %1151 = vmatpush2.msra.mxu0 0.0
    %1152 = vmatprep.subr.mxu0 0.0
    %1153 = vmatpush2.msra.mxu0 0.0
    %1154 = vmatprep.subr.mxu0 0.0
    %1155 = vmatpush2.msra.mxu0 0.0
    %1156 = vmatprep.mubr.f32.mxu0 0.0
    %1157 = vmatmul.mubr.f32.gmra.mxu0 %v1087
    %v1158 = vpop.f32.mrf.mxu0
    %v1159 = vadd.f32 %v1085, %v1158
    %v1160 = vpop.f32.mrf.mxu0
    %1161 = vmatprep.mubr.f32.mxu0 0.0
    %1162 = vmatmul.mubr.f32.gmra.mxu0 %v1090
    %v1163 = vpop.f32.mrf.mxu0
    %v1164 = vadd.f32 %v1085, %v1163
    %v1165 = vpop.f32.mrf.mxu0
    %1166 = vdwg.mxu0
    %1167 = vst.msk [vmem:[#allocation3] sm:$0xff] %vm52, %v1159
    %1168 = vst.msk [vmem:[#allocation3 + $0x8] sm:$0xff] %vm52, %v1164
    %1169 = vst.msk [vmem:[#allocation5 - $0x6] sm:$0xc0] %vm608, %v1072
    // Predicated region
    $region26: #{tpu_custom_call.1} parent=1 // pred_check
      _
    $region27: #{tpu_custom_call.1} parent=1 // pred_check_branch
      %1171 = sbr.rel (0) target = $region29
    $region28: #{tpu_custom_call.1} parent=1 // pred_region
      %s1173 = ssub.s32 256, 256
      %1174 = vsyncadd [#allocation4], %s1173
      %s1175 = sshll.u32 [#allocation3], 4
      %s1176 = int_to_ptr.vmem [resolvable:$true] %s1175
      %1181 = dma.vmem_to_hbm [thread:$0]  %s1176, 256, %s6, [#allocation4], 128, 128, 8
    $region29: #{tpu_custom_call.1} parent=1 // pred_fallthru
      _
    // Predicated region
    $region30: #{tpu_custom_call.1} parent=1 // pred_check
      _
    $region31: #{tpu_custom_call.1} parent=1 // pred_check_branch
      %1183 = sbr.rel (0) target = $region33
    $region32: #{tpu_custom_call.1} parent=1 // pred_region
      %s1185 = ssub.s32 32, 32
      %1186 = vsyncadd [#allocation6], %s1185
      %s1188 = sshll.u32 [#allocation5], 4
      %s1189 = int_to_ptr.vmem [resolvable:$true] %s1188
      %1191 = dma.vmem_to_hbm [thread:$0]  %s1189, 32, %s7, [#allocation6]
    $region33: #{tpu_custom_call.1} parent=1 // pred_fallthru
      _
    // Predicated region
    $region34: #{tpu_custom_call.1} parent=1 // pred_check
      _
    $region35: #{tpu_custom_call.1} parent=1 // pred_check_branch
      %1193 = sbr.rel (0) target = $region37
    $region36: #{tpu_custom_call.1} parent=1 // pred_region
      %1194 = dma.done [#allocation4], 256
    $region37: #{tpu_custom_call.1} parent=1 // pred_fallthru
      _
    // Predicated region
    $region38: #{tpu_custom_call.1} parent=1 // pred_check
      _
    $region39: #{tpu_custom_call.1} parent=1 // pred_check_branch
      %1196 = sbr.rel (0) target = $region41
    $region40: #{tpu_custom_call.1} parent=1 // pred_region
      %1197 = dma.done [#allocation6], 32
    $region41: #{tpu_custom_call.1} parent=1 // pred_fallthru
      _
    %1198 = vsyncpa [#allocation4], 1
    %1199 = vsyncpa [#allocation6], 1

</llo_original>
